<compile_context>
chip_gen: v7x
topology: tpu7x:2x2x1
jax: 0.10.0
libtpu: 0.0.40
codegen_flags: <defaults>
</compile_context>

<pallas_src>
import functools
import math

import jax
import jax.numpy as jnp
from jax import lax
from jax.experimental import pallas as pl
from jax.experimental.pallas import tpu as pltpu


def _gating_kernel(x_ref, w1_ref, b1_ref, wq_ref, bq_ref, wk_ref, bk_ref,
                   wv_ref, bv_ref, bf_ref, gate_ref, *, seq, num_heads, head_pad):
    inv_seq = 1.0 / seq

    x = x_ref[0]                                                   # (S, D)

    # fc1 + ReLU.
    h = jnp.dot(x, w1_ref[...], preferred_element_type=jnp.float32) + b1_ref[...]
    h = jnp.maximum(h, 0.0)                                        # (S, H)

    # q / k projections. 1/sqrt(head_dim) is pre-folded into wq/bq. Each head's
    # hd columns are zero-padded to a 128-lane group, so per-head slices below
    # are whole tile-aligned vreg blocks; padded lanes are exact zeros.
    q = jnp.dot(h, wq_ref[...], preferred_element_type=jnp.float32) + bq_ref[...]   # (S, nh*128)
    k = jnp.dot(h, wk_ref[...], preferred_element_type=jnp.float32) + bk_ref[...]   # (S, nh*128)

    # Value path folded through (wo @ wout): one small projection replaces the
    # per-head value slices, the out-proj matmul and fc_out.
    vproj = jnp.dot(h, wv_ref[...], preferred_element_type=jnp.float32) + bv_ref[...]  # (S, nh)

    logit = bf_ref[...]                                            # (1, 1) == bo@wout + bout
    for hh in range(num_heads):                                    # static unroll, nh small
        c0 = hh * head_pad
        qh = q[:, c0:c0 + head_pad]                                # (S, 128) aligned tile
        kh = k[:, c0:c0 + head_pad]                                # (S, 128) aligned tile

        # q·kᵀ as a dot_general contraction over the last dims (no explicit .T).
        s = lax.dot_general(qh, kh, (((1,), (1,)), ((), ())),
                            preferred_element_type=jnp.float32)    # (S, S)
        s = s - jnp.max(s, axis=-1, keepdims=True)
        e = jnp.exp(s)
        p = e * pl.reciprocal(jnp.sum(e, axis=-1, keepdims=True), approx=False)

        # mean over the query axis folded through p @ v:
        #   mean_q(p @ v) == (mean_q p) @ v   (exact algebra)
        p_mean = jnp.sum(p, axis=0, keepdims=True) * inv_seq       # (1, S)
        logit = logit + jnp.dot(p_mean, vproj[:, hh:hh + 1],
                                preferred_element_type=jnp.float32)  # (1, 1)

    # Sigmoid; exact reciprocal (approx path could breach the 1e-5 tolerance).
    gate = pl.reciprocal(1.0 + jnp.exp(-logit), approx=False)
    gate_ref[...] = gate.reshape(1, 1, 1)


def attention_gating_forward(x, params, *, num_heads):
    B, T, N, D = x.shape
    S = T * N
    H = params["w1"].shape[1]
    hd = H // num_heads
    head_pad = ((hd + 127) // 128) * 128          # 128-lane-aligned per-head group
    scale = 1.0 / math.sqrt(hd)

    x3 = x.reshape(B, S, D).astype(jnp.float32)

    # ---- host-side exact weight fusions (tiny, once per call) ----
    # out-proj and fc_out folded:  wf = wo @ wout  (H,1),  bf = bo @ wout + bout.
    wf = params["wo"] @ params["wout"]                       # (H, 1)
    bf = params["bo"] @ params["wout"] + params["bout"]      # (1, 1)

    # Value path folded through wf, per head:
    #   vproj[:, h] = h @ wv_fold[:, h] + bv_fold[0, h]
    wf_h = wf[:, 0].reshape(num_heads, hd)                   # (nh, hd)
    wv_fold = jnp.einsum("ihd,hd->ih",
                         params["wv"].reshape(H, num_heads, hd), wf_h)          # (H, nh)
    bv_fold = jnp.sum(params["bv"].reshape(num_heads, hd) * wf_h, axis=-1)[None, :]  # (1, nh)

    # q/k projections: fold the softmax scale into wq/bq and zero-pad each
    # head's columns to a 128-lane group (exact: padded lanes stay zero).
    def pad_heads(w, b):
        w_h = w.reshape(w.shape[0], num_heads, hd)
        b_h = b.reshape(1, num_heads, hd)
        w_p = jnp.pad(w_h, ((0, 0), (0, 0), (0, head_pad - hd)))
        b_p = jnp.pad(b_h, ((0, 0), (0, 0), (0, head_pad - hd)))
        return (w_p.reshape(w.shape[0], num_heads * head_pad),
                b_p.reshape(1, num_heads * head_pad))

    wq_pad, bq_pad = pad_heads(params["wq"] * scale, params["bq"] * scale)
    wk_pad, bk_pad = pad_heads(params["wk"], params["bk"])

    kernel = functools.partial(_gating_kernel, seq=S, num_heads=num_heads,
                               head_pad=head_pad)

    def _full_spec(arr):
        return pl.BlockSpec(arr.shape, lambda b: (0,) * arr.ndim)

    gate3 = pl.pallas_call(
        kernel,
        grid=(B,),
        in_specs=[
            pl.BlockSpec((1, S, D), lambda b: (b, 0, 0)),   # per-batch x block
            _full_spec(params["w1"]), _full_spec(params["b1"]),
            _full_spec(wq_pad), _full_spec(bq_pad),
            _full_spec(wk_pad), _full_spec(bk_pad),
            _full_spec(wv_fold), _full_spec(bv_fold),
            _full_spec(bf),
        ],
        out_specs=pl.BlockSpec((1, 1, 1), lambda b: (b, 0, 0)),
        out_shape=jax.ShapeDtypeStruct((B, 1, 1), jnp.float32),
        compiler_params=pltpu.CompilerParams(
            dimension_semantics=("parallel",)),
    )(x3, params["w1"], params["b1"], wq_pad, bq_pad, wk_pad, bk_pad,
      wv_fold, bv_fold, bf)

    return gate3.reshape(B, 1)


def reference_forward(x, params, *, num_heads):
    """Pure-JAX reference mirroring the PyTorch module."""
    B, T, N, D = x.shape
    S = T * N
    H = params["w1"].shape[1]
    hd = H // num_heads
    xx = x.reshape(B, S, D)
    h = jax.nn.relu(xx @ params["w1"] + params["b1"])
    q = h @ params["wq"] + params["bq"]
    k = h @ params["wk"] + params["bk"]
    v = h @ params["wv"] + params["bv"]
    q = q.reshape(B, S, num_heads, hd).transpose(0, 2, 1, 3)
    k = k.reshape(B, S, num_heads, hd).transpose(0, 2, 1, 3)
    v = v.reshape(B, S, num_heads, hd).transpose(0, 2, 1, 3)
    s = jnp.einsum("bhqd,bhkd->bhqk", q, k) / math.sqrt(hd)
    p = jax.nn.softmax(s, axis=-1)
    a = jnp.einsum("bhqk,bhkd->bhqd", p, v).transpose(0, 2, 1, 3).reshape(B, S, H)
    out = a @ params["wo"] + params["bo"]
    pooled = out.mean(axis=1)
    return jax.nn.sigmoid(pooled @ params["wout"] + params["bout"])


def init_params(key, input_dim, hidden_dim):
    """Deterministic synthetic parameters (shapes match the PyTorch module)."""
    ks = jax.random.split(key, 8)
    D, H = input_dim, hidden_dim
    scale = 0.1
    return {
        "w1":   scale * jax.random.normal(ks[0], (D, H), jnp.float32),
        "b1":   scale * jax.random.normal(ks[1], (1, H), jnp.float32),
        "wq":   scale * jax.random.normal(ks[2], (H, H), jnp.float32),
        "bq":   jnp.zeros((1, H), jnp.float32),
        "wk":   scale * jax.random.normal(ks[3], (H, H), jnp.float32),
        "bk":   jnp.zeros((1, H), jnp.float32),
        "wv":   scale * jax.random.normal(ks[4], (H, H), jnp.float32),
        "bv":   jnp.zeros((1, H), jnp.float32),
        "wo":   scale * jax.random.normal(ks[5], (H, H), jnp.float32),
        "bo":   jnp.zeros((1, H), jnp.float32),
        "wout": scale * jax.random.normal(ks[6], (H, 1), jnp.float32),
        "bout": scale * jax.random.normal(ks[7], (1, 1), jnp.float32),
    }


if __name__ == "__main__":
    B, T, N, D = 2, 2, 4, 16
    H, num_heads = 32, 4

    key = jax.random.PRNGKey(0)
    kx, kp = jax.random.split(key)
    x = jax.random.normal(kx, (B, T, N, D), jnp.float32)
    params = init_params(kp, D, H)

    gate = attention_gating_forward(x, params, num_heads=num_heads)
    gate = jax.block_until_ready(gate)

    ref = reference_forward(x, params, num_heads=num_heads)
    assert gate.shape == (B, 1)
    assert jnp.allclose(gate, ref, atol=1e-5, rtol=1e-5), (gate, ref)

    print("KERNEL_OK")
</pallas_src>

<mosaic_0001>
module attributes {stable_mosaic.version = 11 : i64} {
  func.func @_gating_kernel(%arg0: i32, %arg1: memref<1x8x16xf32, #tpu.memory_space<vmem>>, %arg2: memref<16x32xf32, #tpu.memory_space<vmem>>, %arg3: memref<1x32xf32, #tpu.memory_space<vmem>>, %arg4: memref<32x512xf32, #tpu.memory_space<vmem>>, %arg5: memref<1x512xf32, #tpu.memory_space<vmem>>, %arg6: memref<32x512xf32, #tpu.memory_space<vmem>>, %arg7: memref<1x512xf32, #tpu.memory_space<vmem>>, %arg8: memref<32x4xf32, #tpu.memory_space<vmem>>, %arg9: memref<1x4xf32, #tpu.memory_space<vmem>>, %arg10: memref<1x1xf32, #tpu.memory_space<vmem>>, %arg11: memref<1x1x1xf32, #tpu.memory_space<vmem>>) attributes {dimension_semantics = [#tpu.dimension_semantics<parallel>], iteration_bounds = array<i64: 2>, scalar_prefetch = 0 : i64, scratch_operands = 0 : i64, tpu.core_type = #tpu.core_type<tc>, window_params = [{transform_indices = @transform_0, window_bounds = array<i64: 1, 8, 16>}, {pipeline_mode = #tpu.pipeline_mode<synchronous>, transform_indices = @transform_1, window_bounds = array<i64: 16, 32>}, {pipeline_mode = #tpu.pipeline_mode<synchronous>, transform_indices = @transform_2, window_bounds = array<i64: 1, 32>}, {pipeline_mode = #tpu.pipeline_mode<synchronous>, transform_indices = @transform_3, window_bounds = array<i64: 32, 512>}, {pipeline_mode = #tpu.pipeline_mode<synchronous>, transform_indices = @transform_4, window_bounds = array<i64: 1, 512>}, {pipeline_mode = #tpu.pipeline_mode<synchronous>, transform_indices = @transform_5, window_bounds = array<i64: 32, 512>}, {pipeline_mode = #tpu.pipeline_mode<synchronous>, transform_indices = @transform_6, window_bounds = array<i64: 1, 512>}, {pipeline_mode = #tpu.pipeline_mode<synchronous>, transform_indices = @transform_7, window_bounds = array<i64: 32, 4>}, {pipeline_mode = #tpu.pipeline_mode<synchronous>, transform_indices = @transform_8, window_bounds = array<i64: 1, 4>}, {pipeline_mode = #tpu.pipeline_mode<synchronous>, transform_indices = @transform_9, window_bounds = array<i64: 1, 1>}, {transform_indices = @transform_10, window_bounds = array<i64: 1, 1, 1>}]} {
    %c0 = arith.constant 0 : index
    %c0_0 = arith.constant 0 : index
    %c0_1 = arith.constant 0 : index
    %0 = vector.load %arg1[%c0, %c0_0, %c0_1] : memref<1x8x16xf32, #tpu.memory_space<vmem>>, vector<1x8x16xf32>
    %1 = vector.shape_cast %0 : vector<1x8x16xf32> to vector<8x16xf32>
    %c0_2 = arith.constant 0 : index
    %c0_3 = arith.constant 0 : index
    %2 = vector.load %arg2[%c0_2, %c0_3] : memref<16x32xf32, #tpu.memory_space<vmem>>, vector<16x32xf32>
    %cst = arith.constant dense<0.000000e+00> : vector<8x32xf32>
    %3 = tpu.matmul %1, %2, %cst {dimension_numbers = #tpu.dot_dimension_numbers<[1], [0], [0], [1], [0, 0, 1, 1], [], []>} : vector<8x16xf32>, vector<16x32xf32>, vector<8x32xf32> -> vector<8x32xf32>
    %c0_4 = arith.constant 0 : index
    %c0_5 = arith.constant 0 : index
    %4 = vector.load %arg3[%c0_4, %c0_5] : memref<1x32xf32, #tpu.memory_space<vmem>>, vector<1x32xf32>
    %5 = vector.broadcast %4 : vector<1x32xf32> to vector<8x32xf32>
    %6 = arith.addf %3, %5 : vector<8x32xf32>
    %cst_6 = arith.constant 0.000000e+00 : f32
    %7 = vector.broadcast %cst_6 : f32 to vector<8x32xf32>
    %8 = arith.maximumf %6, %7 : vector<8x32xf32>
    %c0_7 = arith.constant 0 : index
    %c0_8 = arith.constant 0 : index
    %9 = vector.load %arg4[%c0_7, %c0_8] : memref<32x512xf32, #tpu.memory_space<vmem>>, vector<32x512xf32>
    %cst_9 = arith.constant dense<0.000000e+00> : vector<8x512xf32>
    %10 = tpu.matmul %8, %9, %cst_9 {dimension_numbers = #tpu.dot_dimension_numbers<[1], [0], [0], [1], [0, 0, 1, 1], [], []>} : vector<8x32xf32>, vector<32x512xf32>, vector<8x512xf32> -> vector<8x512xf32>
    %c0_10 = arith.constant 0 : index
    %c0_11 = arith.constant 0 : index
    %11 = vector.load %arg5[%c0_10, %c0_11] : memref<1x512xf32, #tpu.memory_space<vmem>>, vector<1x512xf32>
    %12 = vector.broadcast %11 : vector<1x512xf32> to vector<8x512xf32>
    %13 = arith.addf %10, %12 : vector<8x512xf32>
    %c0_12 = arith.constant 0 : index
    %c0_13 = arith.constant 0 : index
    %14 = vector.load %arg6[%c0_12, %c0_13] : memref<32x512xf32, #tpu.memory_space<vmem>>, vector<32x512xf32>
    %cst_14 = arith.constant dense<0.000000e+00> : vector<8x512xf32>
    %15 = tpu.matmul %8, %14, %cst_14 {dimension_numbers = #tpu.dot_dimension_numbers<[1], [0], [0], [1], [0, 0, 1, 1], [], []>} : vector<8x32xf32>, vector<32x512xf32>, vector<8x512xf32> -> vector<8x512xf32>
    %c0_15 = arith.constant 0 : index
    %c0_16 = arith.constant 0 : index
    %16 = vector.load %arg7[%c0_15, %c0_16] : memref<1x512xf32, #tpu.memory_space<vmem>>, vector<1x512xf32>
    %17 = vector.broadcast %16 : vector<1x512xf32> to vector<8x512xf32>
    %18 = arith.addf %15, %17 : vector<8x512xf32>
    %c0_17 = arith.constant 0 : index
    %c0_18 = arith.constant 0 : index
    %19 = vector.load %arg8[%c0_17, %c0_18] : memref<32x4xf32, #tpu.memory_space<vmem>>, vector<32x4xf32>
    %cst_19 = arith.constant dense<0.000000e+00> : vector<8x4xf32>
    %20 = tpu.matmul %8, %19, %cst_19 {dimension_numbers = #tpu.dot_dimension_numbers<[1], [0], [0], [1], [0, 0, 1, 1], [], []>} : vector<8x32xf32>, vector<32x4xf32>, vector<8x4xf32> -> vector<8x4xf32>
    %c0_20 = arith.constant 0 : index
    %c0_21 = arith.constant 0 : index
    %21 = vector.load %arg9[%c0_20, %c0_21] : memref<1x4xf32, #tpu.memory_space<vmem>>, vector<1x4xf32>
    %22 = vector.broadcast %21 : vector<1x4xf32> to vector<8x4xf32>
    %23 = arith.addf %20, %22 : vector<8x4xf32>
    %c0_22 = arith.constant 0 : index
    %c0_23 = arith.constant 0 : index
    %24 = vector.load %arg10[%c0_22, %c0_23] : memref<1x1xf32, #tpu.memory_space<vmem>>, vector<1x1xf32>
    %25 = vector.extract_strided_slice %13 {offsets = [0, 0], sizes = [8, 128], strides = [1, 1]} : vector<8x512xf32> to vector<8x128xf32>
    %26 = vector.extract_strided_slice %18 {offsets = [0, 0], sizes = [8, 128], strides = [1, 1]} : vector<8x512xf32> to vector<8x128xf32>
    %cst_24 = arith.constant dense<0.000000e+00> : vector<8x8xf32>
    %27 = tpu.matmul %25, %26, %cst_24 {dimension_numbers = #tpu.dot_dimension_numbers<[1], [1], [0], [0], [0, 0, 1, 0], [], []>} : vector<8x128xf32>, vector<8x128xf32>, vector<8x8xf32> -> vector<8x8xf32>
    %cst_25 = arith.constant dense<0xFF800000> : vector<8xf32>
    %28 = vector.multi_reduction <maximumf>, %27, %cst_25 [1] : vector<8x8xf32> to vector<8xf32>
    %29 = vector.shape_cast %28 : vector<8xf32> to vector<8x1xf32>
    %30 = vector.broadcast %29 : vector<8x1xf32> to vector<8x8xf32>
    %31 = arith.subf %27, %30 : vector<8x8xf32>
    %32 = math.exp %31 : vector<8x8xf32>
    %cst_26 = arith.constant dense<0.000000e+00> : vector<8xf32>
    %33 = vector.multi_reduction <add>, %32, %cst_26 [1] : vector<8x8xf32> to vector<8xf32>
    %34 = vector.shape_cast %33 : vector<8xf32> to vector<8x1xf32>
    %35 = tpu.reciprocal %34 : vector<8x1xf32> -> vector<8x1xf32>
    %36 = vector.broadcast %35 : vector<8x1xf32> to vector<8x8xf32>
    %37 = arith.mulf %32, %36 : vector<8x8xf32>
    %cst_27 = arith.constant dense<0.000000e+00> : vector<8xf32>
    %38 = vector.multi_reduction <add>, %37, %cst_27 [0] : vector<8x8xf32> to vector<8xf32>
    %39 = vector.shape_cast %38 : vector<8xf32> to vector<1x8xf32>
    %cst_28 = arith.constant 1.250000e-01 : f32
    %40 = vector.broadcast %cst_28 : f32 to vector<1x8xf32>
    %41 = arith.mulf %39, %40 : vector<1x8xf32>
    %42 = vector.extract_strided_slice %23 {offsets = [0, 0], sizes = [8, 1], strides = [1, 1]} : vector<8x4xf32> to vector<8x1xf32>
    %cst_29 = arith.constant dense<0.000000e+00> : vector<1x1xf32>
    %43 = tpu.matmul %41, %42, %cst_29 {dimension_numbers = #tpu.dot_dimension_numbers<[1], [0], [0], [1], [0, 0, 1, 1], [], []>} : vector<1x8xf32>, vector<8x1xf32>, vector<1x1xf32> -> vector<1x1xf32>
    %44 = arith.addf %24, %43 : vector<1x1xf32>
    %45 = vector.extract_strided_slice %13 {offsets = [0, 128], sizes = [8, 128], strides = [1, 1]} : vector<8x512xf32> to vector<8x128xf32>
    %46 = vector.extract_strided_slice %18 {offsets = [0, 128], sizes = [8, 128], strides = [1, 1]} : vector<8x512xf32> to vector<8x128xf32>
    %cst_30 = arith.constant dense<0.000000e+00> : vector<8x8xf32>
    %47 = tpu.matmul %45, %46, %cst_30 {dimension_numbers = #tpu.dot_dimension_numbers<[1], [1], [0], [0], [0, 0, 1, 0], [], []>} : vector<8x128xf32>, vector<8x128xf32>, vector<8x8xf32> -> vector<8x8xf32>
    %cst_31 = arith.constant dense<0xFF800000> : vector<8xf32>
    %48 = vector.multi_reduction <maximumf>, %47, %cst_31 [1] : vector<8x8xf32> to vector<8xf32>
    %49 = vector.shape_cast %48 : vector<8xf32> to vector<8x1xf32>
    %50 = vector.broadcast %49 : vector<8x1xf32> to vector<8x8xf32>
    %51 = arith.subf %47, %50 : vector<8x8xf32>
    %52 = math.exp %51 : vector<8x8xf32>
    %cst_32 = arith.constant dense<0.000000e+00> : vector<8xf32>
    %53 = vector.multi_reduction <add>, %52, %cst_32 [1] : vector<8x8xf32> to vector<8xf32>
    %54 = vector.shape_cast %53 : vector<8xf32> to vector<8x1xf32>
    %55 = tpu.reciprocal %54 : vector<8x1xf32> -> vector<8x1xf32>
    %56 = vector.broadcast %55 : vector<8x1xf32> to vector<8x8xf32>
    %57 = arith.mulf %52, %56 : vector<8x8xf32>
    %cst_33 = arith.constant dense<0.000000e+00> : vector<8xf32>
    %58 = vector.multi_reduction <add>, %57, %cst_33 [0] : vector<8x8xf32> to vector<8xf32>
    %59 = vector.shape_cast %58 : vector<8xf32> to vector<1x8xf32>
    %cst_34 = arith.constant 1.250000e-01 : f32
    %60 = vector.broadcast %cst_34 : f32 to vector<1x8xf32>
    %61 = arith.mulf %59, %60 : vector<1x8xf32>
    %62 = vector.extract_strided_slice %23 {offsets = [0, 1], sizes = [8, 1], strides = [1, 1]} : vector<8x4xf32> to vector<8x1xf32>
    %cst_35 = arith.constant dense<0.000000e+00> : vector<1x1xf32>
    %63 = tpu.matmul %61, %62, %cst_35 {dimension_numbers = #tpu.dot_dimension_numbers<[1], [0], [0], [1], [0, 0, 1, 1], [], []>} : vector<1x8xf32>, vector<8x1xf32>, vector<1x1xf32> -> vector<1x1xf32>
    %64 = arith.addf %44, %63 : vector<1x1xf32>
    %65 = vector.extract_strided_slice %13 {offsets = [0, 256], sizes = [8, 128], strides = [1, 1]} : vector<8x512xf32> to vector<8x128xf32>
    %66 = vector.extract_strided_slice %18 {offsets = [0, 256], sizes = [8, 128], strides = [1, 1]} : vector<8x512xf32> to vector<8x128xf32>
    %cst_36 = arith.constant dense<0.000000e+00> : vector<8x8xf32>
    %67 = tpu.matmul %65, %66, %cst_36 {dimension_numbers = #tpu.dot_dimension_numbers<[1], [1], [0], [0], [0, 0, 1, 0], [], []>} : vector<8x128xf32>, vector<8x128xf32>, vector<8x8xf32> -> vector<8x8xf32>
    %cst_37 = arith.constant dense<0xFF800000> : vector<8xf32>
    %68 = vector.multi_reduction <maximumf>, %67, %cst_37 [1] : vector<8x8xf32> to vector<8xf32>
    %69 = vector.shape_cast %68 : vector<8xf32> to vector<8x1xf32>
    %70 = vector.broadcast %69 : vector<8x1xf32> to vector<8x8xf32>
    %71 = arith.subf %67, %70 : vector<8x8xf32>
    %72 = math.exp %71 : vector<8x8xf32>
    %cst_38 = arith.constant dense<0.000000e+00> : vector<8xf32>
    %73 = vector.multi_reduction <add>, %72, %cst_38 [1] : vector<8x8xf32> to vector<8xf32>
    %74 = vector.shape_cast %73 : vector<8xf32> to vector<8x1xf32>
    %75 = tpu.reciprocal %74 : vector<8x1xf32> -> vector<8x1xf32>
    %76 = vector.broadcast %75 : vector<8x1xf32> to vector<8x8xf32>
    %77 = arith.mulf %72, %76 : vector<8x8xf32>
    %cst_39 = arith.constant dense<0.000000e+00> : vector<8xf32>
    %78 = vector.multi_reduction <add>, %77, %cst_39 [0] : vector<8x8xf32> to vector<8xf32>
    %79 = vector.shape_cast %78 : vector<8xf32> to vector<1x8xf32>
    %cst_40 = arith.constant 1.250000e-01 : f32
    %80 = vector.broadcast %cst_40 : f32 to vector<1x8xf32>
    %81 = arith.mulf %79, %80 : vector<1x8xf32>
    %82 = vector.extract_strided_slice %23 {offsets = [0, 2], sizes = [8, 1], strides = [1, 1]} : vector<8x4xf32> to vector<8x1xf32>
    %cst_41 = arith.constant dense<0.000000e+00> : vector<1x1xf32>
    %83 = tpu.matmul %81, %82, %cst_41 {dimension_numbers = #tpu.dot_dimension_numbers<[1], [0], [0], [1], [0, 0, 1, 1], [], []>} : vector<1x8xf32>, vector<8x1xf32>, vector<1x1xf32> -> vector<1x1xf32>
    %84 = arith.addf %64, %83 : vector<1x1xf32>
    %85 = vector.extract_strided_slice %13 {offsets = [0, 384], sizes = [8, 128], strides = [1, 1]} : vector<8x512xf32> to vector<8x128xf32>
    %86 = vector.extract_strided_slice %18 {offsets = [0, 384], sizes = [8, 128], strides = [1, 1]} : vector<8x512xf32> to vector<8x128xf32>
    %cst_42 = arith.constant dense<0.000000e+00> : vector<8x8xf32>
    %87 = tpu.matmul %85, %86, %cst_42 {dimension_numbers = #tpu.dot_dimension_numbers<[1], [1], [0], [0], [0, 0, 1, 0], [], []>} : vector<8x128xf32>, vector<8x128xf32>, vector<8x8xf32> -> vector<8x8xf32>
    %cst_43 = arith.constant dense<0xFF800000> : vector<8xf32>
    %88 = vector.multi_reduction <maximumf>, %87, %cst_43 [1] : vector<8x8xf32> to vector<8xf32>
    %89 = vector.shape_cast %88 : vector<8xf32> to vector<8x1xf32>
    %90 = vector.broadcast %89 : vector<8x1xf32> to vector<8x8xf32>
    %91 = arith.subf %87, %90 : vector<8x8xf32>
    %92 = math.exp %91 : vector<8x8xf32>
    %cst_44 = arith.constant dense<0.000000e+00> : vector<8xf32>
    %93 = vector.multi_reduction <add>, %92, %cst_44 [1] : vector<8x8xf32> to vector<8xf32>
    %94 = vector.shape_cast %93 : vector<8xf32> to vector<8x1xf32>
    %95 = tpu.reciprocal %94 : vector<8x1xf32> -> vector<8x1xf32>
    %96 = vector.broadcast %95 : vector<8x1xf32> to vector<8x8xf32>
    %97 = arith.mulf %92, %96 : vector<8x8xf32>
    %cst_45 = arith.constant dense<0.000000e+00> : vector<8xf32>
    %98 = vector.multi_reduction <add>, %97, %cst_45 [0] : vector<8x8xf32> to vector<8xf32>
    %99 = vector.shape_cast %98 : vector<8xf32> to vector<1x8xf32>
    %cst_46 = arith.constant 1.250000e-01 : f32
    %100 = vector.broadcast %cst_46 : f32 to vector<1x8xf32>
    %101 = arith.mulf %99, %100 : vector<1x8xf32>
    %102 = vector.extract_strided_slice %23 {offsets = [0, 3], sizes = [8, 1], strides = [1, 1]} : vector<8x4xf32> to vector<8x1xf32>
    %cst_47 = arith.constant dense<0.000000e+00> : vector<1x1xf32>
    %103 = tpu.matmul %101, %102, %cst_47 {dimension_numbers = #tpu.dot_dimension_numbers<[1], [0], [0], [1], [0, 0, 1, 1], [], []>} : vector<1x8xf32>, vector<8x1xf32>, vector<1x1xf32> -> vector<1x1xf32>
    %104 = arith.addf %84, %103 : vector<1x1xf32>
    %cst_48 = arith.constant 0.000000e+00 : f32
    %105 = vector.broadcast %cst_48 : f32 to vector<1x1xf32>
    %106 = arith.subf %105, %104 : vector<1x1xf32>
    %107 = math.exp %106 : vector<1x1xf32>
    %cst_49 = arith.constant 1.000000e+00 : f32
    %108 = vector.broadcast %cst_49 : f32 to vector<1x1xf32>
    %109 = arith.addf %108, %107 : vector<1x1xf32>
    %110 = tpu.reciprocal %109 : vector<1x1xf32> -> vector<1x1xf32>
    %111 = vector.shape_cast %110 : vector<1x1xf32> to vector<1x1x1xf32>
    %c0_50 = arith.constant 0 : index
    %c0_51 = arith.constant 0 : index
    %c0_52 = arith.constant 0 : index
    %112 = vector.load %arg11[%c0_50, %c0_51, %c0_52] : memref<1x1x1xf32, #tpu.memory_space<vmem>>, vector<1x1x1xf32>
    tpu.vector_store %arg11[%c0_50, %c0_51, %c0_52], %111 {strides = array<i32>} : memref<1x1x1xf32, #tpu.memory_space<vmem>>, vector<1x1x1xf32>,
    return
  }
  func.func @transform_0(%arg0: i32) -> (i32, i32, i32) {
    %c0_i32 = arith.constant 0 : i32
    %c0_i32_0 = arith.constant 0 : i32
    %c0_i32_1 = arith.constant 0 : i32
    return %arg0, %c0_i32, %c0_i32_0 : i32, i32, i32
  }
  func.func @transform_1(%arg0: i32) -> (i32, i32) {
    %c0_i32 = arith.constant 0 : i32
    %c0_i32_0 = arith.constant 0 : i32
    %c0_i32_1 = arith.constant 0 : i32
    return %c0_i32, %c0_i32_0 : i32, i32
  }
  func.func @transform_2(%arg0: i32) -> (i32, i32) {
    %c0_i32 = arith.constant 0 : i32
    %c0_i32_0 = arith.constant 0 : i32
    %c0_i32_1 = arith.constant 0 : i32
    return %c0_i32, %c0_i32_0 : i32, i32
  }
  func.func @transform_3(%arg0: i32) -> (i32, i32) {
    %c0_i32 = arith.constant 0 : i32
    %c0_i32_0 = arith.constant 0 : i32
    %c0_i32_1 = arith.constant 0 : i32
    return %c0_i32, %c0_i32_0 : i32, i32
  }
  func.func @transform_4(%arg0: i32) -> (i32, i32) {
    %c0_i32 = arith.constant 0 : i32
    %c0_i32_0 = arith.constant 0 : i32
    %c0_i32_1 = arith.constant 0 : i32
    return %c0_i32, %c0_i32_0 : i32, i32
  }
  func.func @transform_5(%arg0: i32) -> (i32, i32) {
    %c0_i32 = arith.constant 0 : i32
    %c0_i32_0 = arith.constant 0 : i32
    %c0_i32_1 = arith.constant 0 : i32
    return %c0_i32, %c0_i32_0 : i32, i32
  }
  func.func @transform_6(%arg0: i32) -> (i32, i32) {
    %c0_i32 = arith.constant 0 : i32
    %c0_i32_0 = arith.constant 0 : i32
    %c0_i32_1 = arith.constant 0 : i32
    return %c0_i32, %c0_i32_0 : i32, i32
  }
  func.func @transform_7(%arg0: i32) -> (i32, i32) {
    %c0_i32 = arith.constant 0 : i32
    %c0_i32_0 = arith.constant 0 : i32
    %c0_i32_1 = arith.constant 0 : i32
    return %c0_i32, %c0_i32_0 : i32, i32
  }
  func.func @transform_8(%arg0: i32) -> (i32, i32) {
    %c0_i32 = arith.constant 0 : i32
    %c0_i32_0 = arith.constant 0 : i32
    %c0_i32_1 = arith.constant 0 : i32
    return %c0_i32, %c0_i32_0 : i32, i32
  }
  func.func @transform_9(%arg0: i32) -> (i32, i32) {
    %c0_i32 = arith.constant 0 : i32
    %c0_i32_0 = arith.constant 0 : i32
    %c0_i32_1 = arith.constant 0 : i32
    return %c0_i32, %c0_i32_0 : i32, i32
  }
  func.func @transform_10(%arg0: i32) -> (i32, i32, i32) {
    %c0_i32 = arith.constant 0 : i32
    %c0_i32_0 = arith.constant 0 : i32
    %c0_i32_1 = arith.constant 0 : i32
    return %arg0, %c0_i32, %c0_i32_0 : i32, i32, i32
  }
}

</mosaic_0001>

<llo_original>
// kernel: tpu_custom_call.1
$region0: #{tpu_custom_call.1}
  #allocation0 [shape = 'u32[]', space=smem, size = 0x4, offset = 0x4, fixed_abs, tag = 'smem constant byte address 0x4 - core index']
  #allocation1 [shape = 'u32[144,128]{1,0:T(1,128)}', space=vmem, size = 0x12000, scoped, tag = 'internal scratch']
  #allocation2 [shape = 'f32[1,1]{1,0:T(1,128)S(1)}', space=vmem, size = 0x200, scoped, tag = 'scoped memory for tpu_custom_call.1']
  %s0 = inlined_call_operand.vmem [shape: f32[2,8,16], index: 0, kind: input, shape index: {}]
  %s1 = inlined_call_operand.vmem [shape: f32[16,32], index: 1, kind: input, shape index: {}]
  %s2 = inlined_call_operand.vmem [shape: f32[1,32], index: 2, kind: input, shape index: {}]
  %s3 = inlined_call_operand.hbm [shape: f32[32,512], index: 3, kind: input, shape index: {}]
  %s4 = inlined_call_operand.vmem [shape: f32[1,512], index: 4, kind: input, shape index: {}]
  %s5 = inlined_call_operand.hbm [shape: f32[32,512], index: 5, kind: input, shape index: {}]
  %s6 = inlined_call_operand.vmem [shape: f32[1,512], index: 6, kind: input, shape index: {}]
  %s7 = inlined_call_operand.vmem [shape: f32[32,4], index: 7, kind: input, shape index: {}]
  %s8 = inlined_call_operand.vmem [shape: f32[1,4], index: 8, kind: input, shape index: {}]
  %s9 = inlined_call_operand.<no memory space> [shape: f32[1,1], index: 9, kind: input, shape index: {}]
  %s10 = inlined_call_operand.vmem [shape: f32[2,1,1], index: 10, kind: output, shape index: {}]
  %s11 = sld [smem:[#allocation0]]
  $region81: #{tpu_custom_call.1} parent=0
    _
  %s13 = ssub.s32 1, %s11
  %s14 = scalar_select 0, %s13, %s11
  %v15 = vstv %s9
  %16 = vst [vmem:[#allocation2] sm:$0x1] %v15
  $region1: #{tpu_custom_call.1} parent=0
    #allocation3 [shape = 'u8[65536]{0}', space=vmem, size = 0x10000, scoped, tag = 'input window, operand 3, single buffered']
    #allocation4 [shape = 's32[2]{0}', space=sflag, size = 0x8, scoped, tag = 'scoped memory for tpu_custom_call.1']
    #allocation5 [shape = 'u8[65536]{0}', space=vmem, size = 0x10000, scoped, tag = 'input window, operand 5, single buffered']
    #allocation6 [shape = 's32[1]{0}', space=sflag, size = 0x4, scoped, tag = 'scoped memory for tpu_custom_call.1']
    %17 = vsyncpa [#allocation4], 0
    %18 = vsyncpa [#allocation6], 0
    loop: start=0, step=1, limit=4
    $region2: #{tpu_custom_call.1} parent=1 // loop_pre_header
      _
    $region3: #{tpu_custom_call.1} parent=1 // loop_header
      %s20 = sphi 0, %s24
      %p21 = scmp.ge.s32.totalorder %s20, 4
      %s30 = sphi 0, %s32
      %s33 = sphi 0, %s30
      %s34 = sphi 0, %s33
      %s50 = sphi 0, %s34
      %s54 = sphi 0, %s54
      %s56 = sphi 0, %s54
      %s57 = sphi 0, %s56
      %s71 = sphi 0, %s57
      %s75 = sphi 0, %s75
      %s77 = sphi 0, %s75
      %s78 = sphi 0, %s77
      %s92 = sphi 0, %s78
      %s96 = sphi 0, %s96
      %s98 = sphi 0, %s96
      %s99 = sphi 0, %s98
      %s113 = sphi 0, %s99
      %s117 = sphi 0, %s117
      %s119 = sphi 0, %s117
      %s120 = sphi 0, %s119
      %s134 = sphi 0, %s120
      %s138 = sphi 0, %s138
      %s140 = sphi 0, %s138
      %s141 = sphi 0, %s140
      %s155 = sphi 0, %s141
      %s159 = sphi 0, %s159
      %s161 = sphi 0, %s159
      %s162 = sphi 0, %s161
      %s176 = sphi 0, %s162
      %s180 = sphi 0, %s180
      %s182 = sphi 0, %s180
      %s183 = sphi 0, %s182
      %s197 = sphi 0, %s183
      %s201 = sphi 0, %s201
      %s203 = sphi 0, %s201
      %s204 = sphi 0, %s203
      %s218 = sphi 0, %s204
      %s222 = sphi 0, %s222
      %s224 = sphi 0, %s222
      %s225 = sphi 0, %s224
      %s239 = sphi 0, %s225
      %s245 = sphi 0, %s247
      %s248 = sphi 0, %s245
      %s249 = sphi 0, %s248
      %s265 = sphi 0, %s249
    $region4: #{tpu_custom_call.1} parent=1 // loop_header_branch
      %23 = sbr.rel (%p21) target = $region8
    $region5: #{tpu_custom_call.1} parent=1 // loop_body
      %s25 = ssub.s32 %s20, 1
      %s26 = ssub.s32 %s20, 2
      %s27 = sadd.s32 %s20, 1
      %s28 = ssub.s32 %s20, %s27
      %p29 = scmp.eq.s32.totalorder %s28, 0
      %s31 = sadd.s32 %s30, 1
      %s32 = scalar_select %p29, %s30, %s31
      %p35 = pneg %p29
      %p36 = scmp.eq.s32.totalorder %s20, 1
      %p37 = por %p35, %p36
      %p38 = scmp.ne.s32.totalorder %s30, %s33
      %p39 = scmp.eq.s32.totalorder %s20, 0
      %p40 = por %p38, %p39
      %p41 = scmp.ne.s32.totalorder %s30, %s33
      %p42 = scmp.eq.s32.totalorder %s25, 1
      %p43 = por %p41, %p42
      %p44 = scmp.ne.s32.totalorder %s33, %s34
      %p45 = scmp.eq.s32.totalorder %s25, 0
      %p46 = por %p44, %p45
      %p47 = scmp.ne.s32.totalorder %s33, %s34
      %p48 = scmp.eq.s32.totalorder %s26, 1
      %p49 = por %p47, %p48
      %p51 = scmp.ne.s32.totalorder %s34, %s50
      %p52 = scmp.eq.s32.totalorder %s26, 0
      %p53 = por %p51, %p52
      %s55 = sadd.s32 %s54, 1
      %p58 = scmp.eq.s32.totalorder %s20, 1
      %p59 = scmp.ne.s32.totalorder %s54, %s56
      %p60 = scmp.eq.s32.totalorder %s20, 0
      %p61 = por %p59, %p60
      %p62 = scmp.ne.s32.totalorder %s54, %s56
      %p63 = scmp.eq.s32.totalorder %s25, 1
      %p64 = por %p62, %p63
      %p65 = scmp.ne.s32.totalorder %s56, %s57
      %p66 = scmp.eq.s32.totalorder %s25, 0
      %p67 = por %p65, %p66
      %p68 = scmp.ne.s32.totalorder %s56, %s57
      %p69 = scmp.eq.s32.totalorder %s26, 1
      %p70 = por %p68, %p69
      %p72 = scmp.ne.s32.totalorder %s57, %s71
      %p73 = scmp.eq.s32.totalorder %s26, 0
      %p74 = por %p72, %p73
      %s76 = sadd.s32 %s75, 1
      %p79 = scmp.eq.s32.totalorder %s20, 1
      %p80 = scmp.ne.s32.totalorder %s75, %s77
      %p81 = scmp.eq.s32.totalorder %s20, 0
      %p82 = por %p80, %p81
      %p83 = scmp.ne.s32.totalorder %s75, %s77
      %p84 = scmp.eq.s32.totalorder %s25, 1
      %p85 = por %p83, %p84
      %p86 = scmp.ne.s32.totalorder %s77, %s78
      %p87 = scmp.eq.s32.totalorder %s25, 0
      %p88 = por %p86, %p87
      %p89 = scmp.ne.s32.totalorder %s77, %s78
      %p90 = scmp.eq.s32.totalorder %s26, 1
      %p91 = por %p89, %p90
      %p93 = scmp.ne.s32.totalorder %s78, %s92
      %p94 = scmp.eq.s32.totalorder %s26, 0
      %p95 = por %p93, %p94
      %s97 = sadd.s32 %s96, 1
      %p100 = scmp.eq.s32.totalorder %s20, 1
      %p101 = scmp.ne.s32.totalorder %s96, %s98
      %p102 = scmp.eq.s32.totalorder %s20, 0
      %p103 = por %p101, %p102
      %p104 = scmp.ne.s32.totalorder %s96, %s98
      %p105 = scmp.eq.s32.totalorder %s25, 1
      %p106 = por %p104, %p105
      %p107 = scmp.ne.s32.totalorder %s98, %s99
      %p108 = scmp.eq.s32.totalorder %s25, 0
      %p109 = por %p107, %p108
      %p110 = scmp.ne.s32.totalorder %s98, %s99
      %p111 = scmp.eq.s32.totalorder %s26, 1
      %p112 = por %p110, %p111
      %p114 = scmp.ne.s32.totalorder %s99, %s113
      %p115 = scmp.eq.s32.totalorder %s26, 0
      %p116 = por %p114, %p115
      %s118 = sadd.s32 %s117, 1
      %p121 = scmp.eq.s32.totalorder %s20, 1
      %p122 = scmp.ne.s32.totalorder %s117, %s119
      %p123 = scmp.eq.s32.totalorder %s20, 0
      %p124 = por %p122, %p123
      %p125 = scmp.ne.s32.totalorder %s117, %s119
      %p126 = scmp.eq.s32.totalorder %s25, 1
      %p127 = por %p125, %p126
      %p128 = scmp.ne.s32.totalorder %s119, %s120
      %p129 = scmp.eq.s32.totalorder %s25, 0
      %p130 = por %p128, %p129
      %p131 = scmp.ne.s32.totalorder %s119, %s120
      %p132 = scmp.eq.s32.totalorder %s26, 1
      %p133 = por %p131, %p132
      %p135 = scmp.ne.s32.totalorder %s120, %s134
      %p136 = scmp.eq.s32.totalorder %s26, 0
      %p137 = por %p135, %p136
      %s139 = sadd.s32 %s138, 1
      %p142 = scmp.eq.s32.totalorder %s20, 1
      %p143 = scmp.ne.s32.totalorder %s138, %s140
      %p144 = scmp.eq.s32.totalorder %s20, 0
      %p145 = por %p143, %p144
      %p146 = scmp.ne.s32.totalorder %s138, %s140
      %p147 = scmp.eq.s32.totalorder %s25, 1
      %p148 = por %p146, %p147
      %p149 = scmp.ne.s32.totalorder %s140, %s141
      %p150 = scmp.eq.s32.totalorder %s25, 0
      %p151 = por %p149, %p150
      %p152 = scmp.ne.s32.totalorder %s140, %s141
      %p153 = scmp.eq.s32.totalorder %s26, 1
      %p154 = por %p152, %p153
      %p156 = scmp.ne.s32.totalorder %s141, %s155
      %p157 = scmp.eq.s32.totalorder %s26, 0
      %p158 = por %p156, %p157
      %s160 = sadd.s32 %s159, 1
      %p163 = scmp.eq.s32.totalorder %s20, 1
      %p164 = scmp.ne.s32.totalorder %s159, %s161
      %p165 = scmp.eq.s32.totalorder %s20, 0
      %p166 = por %p164, %p165
      %p167 = scmp.ne.s32.totalorder %s159, %s161
      %p168 = scmp.eq.s32.totalorder %s25, 1
      %p169 = por %p167, %p168
      %p170 = scmp.ne.s32.totalorder %s161, %s162
      %p171 = scmp.eq.s32.totalorder %s25, 0
      %p172 = por %p170, %p171
      %p173 = scmp.ne.s32.totalorder %s161, %s162
      %p174 = scmp.eq.s32.totalorder %s26, 1
      %p175 = por %p173, %p174
      %p177 = scmp.ne.s32.totalorder %s162, %s176
      %p178 = scmp.eq.s32.totalorder %s26, 0
      %p179 = por %p177, %p178
      %s181 = sadd.s32 %s180, 1
      %p184 = scmp.eq.s32.totalorder %s20, 1
      %p185 = scmp.ne.s32.totalorder %s180, %s182
      %p186 = scmp.eq.s32.totalorder %s20, 0
      %p187 = por %p185, %p186
      %p188 = scmp.ne.s32.totalorder %s180, %s182
      %p189 = scmp.eq.s32.totalorder %s25, 1
      %p190 = por %p188, %p189
      %p191 = scmp.ne.s32.totalorder %s182, %s183
      %p192 = scmp.eq.s32.totalorder %s25, 0
      %p193 = por %p191, %p192
      %p194 = scmp.ne.s32.totalorder %s182, %s183
      %p195 = scmp.eq.s32.totalorder %s26, 1
      %p196 = por %p194, %p195
      %p198 = scmp.ne.s32.totalorder %s183, %s197
      %p199 = scmp.eq.s32.totalorder %s26, 0
      %p200 = por %p198, %p199
      %s202 = sadd.s32 %s201, 1
      %p205 = scmp.eq.s32.totalorder %s20, 1
      %p206 = scmp.ne.s32.totalorder %s201, %s203
      %p207 = scmp.eq.s32.totalorder %s20, 0
      %p208 = por %p206, %p207
      %p209 = scmp.ne.s32.totalorder %s201, %s203
      %p210 = scmp.eq.s32.totalorder %s25, 1
      %p211 = por %p209, %p210
      %p212 = scmp.ne.s32.totalorder %s203, %s204
      %p213 = scmp.eq.s32.totalorder %s25, 0
      %p214 = por %p212, %p213
      %p215 = scmp.ne.s32.totalorder %s203, %s204
      %p216 = scmp.eq.s32.totalorder %s26, 1
      %p217 = por %p215, %p216
      %p219 = scmp.ne.s32.totalorder %s204, %s218
      %p220 = scmp.eq.s32.totalorder %s26, 0
      %p221 = por %p219, %p220
      %s223 = sadd.s32 %s222, 1
      %p226 = scmp.eq.s32.totalorder %s20, 1
      %p227 = scmp.ne.s32.totalorder %s222, %s224
      %p228 = scmp.eq.s32.totalorder %s20, 0
      %p229 = por %p227, %p228
      %p230 = scmp.ne.s32.totalorder %s222, %s224
      %p231 = scmp.eq.s32.totalorder %s25, 1
      %p232 = por %p230, %p231
      %p233 = scmp.ne.s32.totalorder %s224, %s225
      %p234 = scmp.eq.s32.totalorder %s25, 0
      %p235 = por %p233, %p234
      %p236 = scmp.ne.s32.totalorder %s224, %s225
      %p237 = scmp.eq.s32.totalorder %s26, 1
      %p238 = por %p236, %p237
      %p240 = scmp.ne.s32.totalorder %s225, %s239
      %p241 = scmp.eq.s32.totalorder %s26, 0
      %p242 = por %p240, %p241
      %s243 = ssub.s32 %s20, %s27
      %p244 = scmp.eq.s32.totalorder %s243, 0
      %s246 = sadd.s32 %s245, 1
      %s247 = scalar_select %p244, %s245, %s246
      %p250 = pneg %p244
      %p251 = scmp.eq.s32.totalorder %s20, 1
      %p252 = por %p250, %p251
      %p253 = scmp.ne.s32.totalorder %s245, %s248
      %p254 = scmp.eq.s32.totalorder %s20, 0
      %p255 = por %p253, %p254
      %p256 = scmp.ne.s32.totalorder %s245, %s248
      %p257 = scmp.eq.s32.totalorder %s25, 1
      %p258 = por %p256, %p257
      %p259 = scmp.ne.s32.totalorder %s248, %s249
      %p260 = scmp.eq.s32.totalorder %s25, 0
      %p261 = por %p259, %p260
      %p262 = scmp.ne.s32.totalorder %s248, %s249
      %p263 = scmp.eq.s32.totalorder %s26, 1
      %p264 = por %p262, %p263
      %p266 = scmp.ne.s32.totalorder %s249, %s265
      %p267 = scmp.eq.s32.totalorder %s26, 0
      %p268 = por %p266, %p267
      %p269 = scmp.le.s32.totalorder 1, %s20
      %p270 = scmp.lt.s32.totalorder %s20, 3
      %p271 = pnand %p269, %p270
      %p272 = pneg %p271
      // Predicated region
      $region9: #{tpu_custom_call.1} parent=5 // pred_check
        _
      $region10: #{tpu_custom_call.1} parent=5 // pred_check_branch
        %274 = sbr.rel (%p271) target = $region12
      $region11: #{tpu_custom_call.1} parent=5 // pred_region
        %s275 = ssub.s32 %s20, 1
        // Predicated region
        $region13: #{tpu_custom_call.1} parent=11 // pred_check
          %p276 = pneg %p67
        $region14: #{tpu_custom_call.1} parent=11 // pred_check_branch
          %278 = sbr.rel (%p276) target = $region16
        $region15: #{tpu_custom_call.1} parent=11 // pred_region
          _
        $region16: #{tpu_custom_call.1} parent=11 // pred_fallthru
          _
        // Predicated region
        $region17: #{tpu_custom_call.1} parent=11 // pred_check
          %p279 = pneg %p88
        $region18: #{tpu_custom_call.1} parent=11 // pred_check_branch
          %281 = sbr.rel (%p279) target = $region20
        $region19: #{tpu_custom_call.1} parent=11 // pred_region
          _
        $region20: #{tpu_custom_call.1} parent=11 // pred_fallthru
          _
        // Predicated region
        $region21: #{tpu_custom_call.1} parent=11 // pred_check
          %p282 = pneg %p109
        $region22: #{tpu_custom_call.1} parent=11 // pred_check_branch
          %284 = sbr.rel (%p282) target = $region24
        $region23: #{tpu_custom_call.1} parent=11 // pred_region
          %s286 = ssub.s32 2048, 2048
          %287 = vsyncadd [#allocation4], %s286
          %s288 = sshll.u32 [#allocation3], 4
          %s289 = int_to_ptr.vmem [resolvable:$true] %s288
          %294 = dma.hbm_to_vmem [thread:$0]  %s3, 2048, %s289, [#allocation4], 512, 512, 32
        $region24: #{tpu_custom_call.1} parent=11 // pred_fallthru
          _
        // Predicated region
        $region25: #{tpu_custom_call.1} parent=11 // pred_check
          %p295 = pneg %p130
        $region26: #{tpu_custom_call.1} parent=11 // pred_check_branch
          %297 = sbr.rel (%p295) target = $region28
        $region27: #{tpu_custom_call.1} parent=11 // pred_region
          _
        $region28: #{tpu_custom_call.1} parent=11 // pred_fallthru
          _
        // Predicated region
        $region29: #{tpu_custom_call.1} parent=11 // pred_check
          %p298 = pneg %p151
        $region30: #{tpu_custom_call.1} parent=11 // pred_check_branch
          %300 = sbr.rel (%p298) target = $region32
        $region31: #{tpu_custom_call.1} parent=11 // pred_region
          %s302 = ssub.s32 2048, 2048
          %303 = vsyncadd [#allocation6], %s302
          %s304 = sshll.u32 [#allocation5], 4
          %s305 = int_to_ptr.vmem [resolvable:$true] %s304
          %310 = dma.hbm_to_vmem [thread:$0]  %s5, 2048, %s305, [#allocation6], 512, 512, 32
        $region32: #{tpu_custom_call.1} parent=11 // pred_fallthru
          _
        // Predicated region
        $region33: #{tpu_custom_call.1} parent=11 // pred_check
          %p311 = pneg %p172
        $region34: #{tpu_custom_call.1} parent=11 // pred_check_branch
          %313 = sbr.rel (%p311) target = $region36
        $region35: #{tpu_custom_call.1} parent=11 // pred_region
          _
        $region36: #{tpu_custom_call.1} parent=11 // pred_fallthru
          _
        // Predicated region
        $region37: #{tpu_custom_call.1} parent=11 // pred_check
          %p314 = pneg %p193
        $region38: #{tpu_custom_call.1} parent=11 // pred_check_branch
          %316 = sbr.rel (%p314) target = $region40
        $region39: #{tpu_custom_call.1} parent=11 // pred_region
          _
        $region40: #{tpu_custom_call.1} parent=11 // pred_fallthru
          _
        // Predicated region
        $region41: #{tpu_custom_call.1} parent=11 // pred_check
          %p317 = pneg %p214
        $region42: #{tpu_custom_call.1} parent=11 // pred_check_branch
          %319 = sbr.rel (%p317) target = $region44
        $region43: #{tpu_custom_call.1} parent=11 // pred_region
          _
        $region44: #{tpu_custom_call.1} parent=11 // pred_fallthru
          _
        // Predicated region
        $region45: #{tpu_custom_call.1} parent=11 // pred_check
          %p320 = pneg %p235
        $region46: #{tpu_custom_call.1} parent=11 // pred_check_branch
          %322 = sbr.rel (%p320) target = $region48
        $region47: #{tpu_custom_call.1} parent=11 // pred_region
          _
        $region48: #{tpu_custom_call.1} parent=11 // pred_fallthru
          _
      $region12: #{tpu_custom_call.1} parent=5 // pred_fallthru
        _
      %p323 = scmp.lt.s32.totalorder %s20, 2
      // Predicated region
      $region49: #{tpu_custom_call.1} parent=5 // pred_check
        %p324 = pneg %p323
      $region50: #{tpu_custom_call.1} parent=5 // pred_check_branch
        %326 = sbr.rel (%p324) target = $region52
      $region51: #{tpu_custom_call.1} parent=5 // pred_region
        // Predicated region
        $region53: #{tpu_custom_call.1} parent=51 // pred_check
          %p327 = pneg %p40
        $region54: #{tpu_custom_call.1} parent=51 // pred_check_branch
          %329 = sbr.rel (%p327) target = $region56
        $region55: #{tpu_custom_call.1} parent=51 // pred_region
          %p330 = scmp.lt.s32.totalorder %s20, 1
          %s331 = scalar_select %p330, %s20, 1
          %s332 = smul.addr %s331, 8
          %s333 = scalar_lea.vmem %s0, %s332
        $region56: #{tpu_custom_call.1} parent=51 // pred_fallthru
          _
      $region52: #{tpu_custom_call.1} parent=5 // pred_fallthru
        _
      %p334 = scmp.le.s32.totalorder 1, %s20
      %p335 = scmp.lt.s32.totalorder %s20, 3
      %p336 = pnand %p334, %p335
      %p337 = pneg %p336
      // Predicated region
      $region57: #{tpu_custom_call.1} parent=5 // pred_check
        _
      $region58: #{tpu_custom_call.1} parent=5 // pred_check_branch
        %339 = sbr.rel (%p336) target = $region60
      $region59: #{tpu_custom_call.1} parent=5 // pred_region
        %s340 = ssub.s32 %s20, 1
        // Predicated region
        $region61: #{tpu_custom_call.1} parent=59 // pred_check
          %p341 = pneg %p109
        $region62: #{tpu_custom_call.1} parent=59 // pred_check_branch
          %343 = sbr.rel (%p341) target = $region64
        $region63: #{tpu_custom_call.1} parent=59 // pred_region
          %344 = dma.done [#allocation4], 2048
        $region64: #{tpu_custom_call.1} parent=59 // pred_fallthru
          _
        // Predicated region
        $region65: #{tpu_custom_call.1} parent=59 // pred_check
          %p345 = pneg %p151
        $region66: #{tpu_custom_call.1} parent=59 // pred_check_branch
          %347 = sbr.rel (%p345) target = $region68
        $region67: #{tpu_custom_call.1} parent=59 // pred_region
          %348 = dma.done [#allocation6], 2048
        $region68: #{tpu_custom_call.1} parent=59 // pred_fallthru
          _
        %p349 = scmp.lt.s32.totalorder %s25, 1
        %s350 = scalar_select %p349, %s25, 1
        %s351 = smul.addr %s350, 8
        %s352 = scalar_lea.vmem %s0, %s351
        %p353 = pneg %p46
        %p354 = pneg %p43
        %p355 = pneg %p67
        %p356 = pneg %p64
        %p357 = pneg %p88
        %p358 = pneg %p85
        %p359 = pneg %p109
        %p360 = pneg %p106
        %p361 = pneg %p130
        %p362 = pneg %p127
        %p363 = pneg %p151
        %p364 = pneg %p148
        %p365 = pneg %p172
        %p366 = pneg %p169
        %p367 = pneg %p193
        %p368 = pneg %p190
        %p369 = pneg %p214
        %p370 = pneg %p211
        %p371 = pneg %p235
        %p372 = pneg %p232
        %p373 = pneg %p261
        %p374 = pneg %p258
        %p375 = scmp.lt.s32.totalorder %s25, 1
        %s376 = scalar_select %p375, %s25, 1
        %s377 = scalar_lea.vmem %s10, %s376
        %p378 = scmp.lt.s32.totalorder %s25, 1
        %s379 = scalar_select %p378, %s25, 1
        %s380 = smul.addr %s379, 8
        %s381 = scalar_lea.vmem %s0, %s380
        %p382 = scmp.lt.s32.totalorder %s25, 1
        %s383 = scalar_select %p382, %s25, 1
        %s384 = scalar_lea.vmem %s10, %s383
        %v385 = vld [vmem:[%s381] sm:$0xff]
        %v386 = vld [vmem:[%s1] sm:$0xff]
        %v387 = vld [vmem:[%s1 + $0x8] sm:$0xff]
        %v388 = vld [vmem:[%s2] sm:$0x1]
        %v390 = vlaneseq
        %v391 = vshrl.u32 %v390, 7
        %v392 = vsub.s32 0, %v391
        %v393 = vrot.slane %v388, %v392
        %vm395 = vcmask 130048
        %v397 = vsel %vm395, %v385, 0
        %399 = vmatprep.subr.mxu0 0.0
        %400 = vmatpush1.msra.mxu0 %v386
        %401 = vmatprep.subr.mxu0 0.0
        %402 = vmatpush1.msra.mxu0 %v387
        %403 = vmatprep.subr.mxu0 0.0
        %404 = vmatpush1.msra.mxu0 0.0
        %405 = vmatprep.subr.mxu0 0.0
        %406 = vmatpush1.msra.mxu0 0.0
        %407 = vmatprep.subr.mxu0 0.0
        %408 = vmatpush1.msra.mxu0 0.0
        %409 = vmatprep.subr.mxu0 0.0
        %410 = vmatpush1.msra.mxu0 0.0
        %411 = vmatprep.subr.mxu0 0.0
        %412 = vmatpush1.msra.mxu0 0.0
        %413 = vmatprep.subr.mxu0 0.0
        %414 = vmatpush1.msra.mxu0 0.0
        %415 = vmatprep.subr.mxu0 0.0
        %416 = vmatpush1.msra.mxu0 0.0
        %417 = vmatprep.subr.mxu0 0.0
        %418 = vmatpush1.msra.mxu0 0.0
        %419 = vmatprep.subr.mxu0 0.0
        %420 = vmatpush1.msra.mxu0 0.0
        %421 = vmatprep.subr.mxu0 0.0
        %422 = vmatpush1.msra.mxu0 0.0
        %423 = vmatprep.subr.mxu0 0.0
        %424 = vmatpush1.msra.mxu0 0.0
        %425 = vmatprep.subr.mxu0 0.0
        %426 = vmatpush1.msra.mxu0 0.0
        %427 = vmatprep.subr.mxu0 0.0
        %428 = vmatpush1.msra.mxu0 0.0
        %429 = vmatprep.subr.mxu0 0.0
        %430 = vmatpush1.msra.mxu0 0.0
        %431 = vmatprep.subr.mxu0 0.0
        %432 = vmatpush1.msra.mxu0 0.0
        %433 = vmatprep.subr.mxu0 0.0
        %434 = vmatpush1.msra.mxu0 0.0
        %435 = vmatprep.subr.mxu0 0.0
        %436 = vmatpush1.msra.mxu0 0.0
        %437 = vmatprep.subr.mxu0 0.0
        %438 = vmatpush1.msra.mxu0 0.0
        %439 = vmatprep.subr.mxu0 0.0
        %440 = vmatpush1.msra.mxu0 0.0
        %441 = vmatprep.subr.mxu0 0.0
        %442 = vmatpush1.msra.mxu0 0.0
        %443 = vmatprep.subr.mxu0 0.0
        %444 = vmatpush1.msra.mxu0 0.0
        %445 = vmatprep.subr.mxu0 0.0
        %446 = vmatpush1.msra.mxu0 0.0
        %447 = vmatprep.subr.mxu0 0.0
        %448 = vmatpush1.msra.mxu0 0.0
        %449 = vmatprep.subr.mxu0 0.0
        %450 = vmatpush1.msra.mxu0 0.0
        %451 = vmatprep.subr.mxu0 0.0
        %452 = vmatpush1.msra.mxu0 0.0
        %453 = vmatprep.subr.mxu0 0.0
        %454 = vmatpush1.msra.mxu0 0.0
        %455 = vmatprep.subr.mxu0 0.0
        %456 = vmatpush1.msra.mxu0 0.0
        %457 = vmatprep.subr.mxu0 0.0
        %458 = vmatpush1.msra.mxu0 0.0
        %459 = vmatprep.subr.mxu0 0.0
        %460 = vmatpush1.msra.mxu0 0.0
        %461 = vmatprep.subr.mxu0 0.0
        %462 = vmatpush1.msra.mxu0 0.0
        %463 = vmatprep.mubr.f32.mxu0 0.0
        %464 = vmatmul.mubr.f32.gmra.mrb[0].mxu0 %v397
        %v465 = vpop.f32.mrb[0].mxu0
        %v466 = vadd.f32 %v393, %v465
        %v467 = vpop.f32.mrb[0].mxu0
        %468 = vdwg.mxu0
        %v469 = vmax.f32 %v466, 0.0
        %v470 = vld [vmem:[#allocation3] sm:$0xff]
        %v471 = vld [vmem:[#allocation3 + $0x8] sm:$0xff]
        %v472 = vld [vmem:[#allocation3 + $0x10] sm:$0xff]
        %v473 = vld [vmem:[#allocation3 + $0x18] sm:$0xff]
        %v474 = vld [vmem:[#allocation3 + $0x20] sm:$0xff]
        %v475 = vld [vmem:[#allocation3 + $0x28] sm:$0xff]
        %v476 = vld [vmem:[#allocation3 + $0x30] sm:$0xff]
        %v477 = vld [vmem:[#allocation3 + $0x38] sm:$0xff]
        %v478 = vld [vmem:[#allocation3 + $0x40] sm:$0xff]
        %v479 = vld [vmem:[#allocation3 + $0x48] sm:$0xff]
        %v480 = vld [vmem:[#allocation3 + $0x50] sm:$0xff]
        %v481 = vld [vmem:[#allocation3 + $0x58] sm:$0xff]
        %v482 = vld [vmem:[#allocation3 + $0x60] sm:$0xff]
        %v483 = vld [vmem:[#allocation3 + $0x68] sm:$0xff]
        %v484 = vld [vmem:[#allocation3 + $0x70] sm:$0xff]
        %v485 = vld [vmem:[#allocation3 + $0x78] sm:$0xff]
        %v486 = vld [vmem:[%s4] sm:$0xf]
        %v488 = vlaneseq
        %v489 = vshrl.u32 %v488, 7
        %v490 = vsub.s32 0, %v489
        %v491 = vrot.slane %v486, %v490
        %v492 = vlaneseq
        %v493 = vshrl.u32 %v492, 7
        %v494 = vsub.s32 1, %v493
        %v495 = vrot.slane %v486, %v494
        %v496 = vlaneseq
        %v497 = vshrl.u32 %v496, 7
        %v498 = vsub.s32 2, %v497
        %v499 = vrot.slane %v486, %v498
        %v500 = vlaneseq
        %v501 = vshrl.u32 %v500, 7
        %v502 = vsub.s32 3, %v501
        %v503 = vrot.slane %v486, %v502
        %vm508 = vcmask 261120
        %v510 = vsel %vm508, %v469, 0
        %512 = vmatprep.subr.mxu0 %v471
        %513 = vmatpush1.msra.mxu0 %v470
        %514 = vmatprep.subr.mxu0 %v475
        %515 = vmatpush1.msra.mxu0 %v474
        %516 = vmatprep.subr.mxu0 %v479
        %517 = vmatpush1.msra.mxu0 %v478
        %518 = vmatprep.subr.mxu0 %v483
        %519 = vmatpush1.msra.mxu0 %v482
        %520 = vmatprep.subr.mxu0 0.0
        %521 = vmatpush1.msra.mxu0 0.0
        %522 = vmatprep.subr.mxu0 0.0
        %523 = vmatpush1.msra.mxu0 0.0
        %524 = vmatprep.subr.mxu0 0.0
        %525 = vmatpush1.msra.mxu0 0.0
        %526 = vmatprep.subr.mxu0 0.0
        %527 = vmatpush1.msra.mxu0 0.0
        %528 = vmatprep.subr.mxu0 0.0
        %529 = vmatpush1.msra.mxu0 0.0
        %530 = vmatprep.subr.mxu0 0.0
        %531 = vmatpush1.msra.mxu0 0.0
        %532 = vmatprep.subr.mxu0 0.0
        %533 = vmatpush1.msra.mxu0 0.0
        %534 = vmatprep.subr.mxu0 0.0
        %535 = vmatpush1.msra.mxu0 0.0
        %536 = vmatprep.subr.mxu0 0.0
        %537 = vmatpush1.msra.mxu0 0.0
        %538 = vmatprep.subr.mxu0 0.0
        %539 = vmatpush1.msra.mxu0 0.0
        %540 = vmatprep.subr.mxu0 0.0
        %541 = vmatpush1.msra.mxu0 0.0
        %542 = vmatprep.subr.mxu0 0.0
        %543 = vmatpush1.msra.mxu0 0.0
        %544 = vmatprep.subr.mxu0 0.0
        %545 = vmatpush1.msra.mxu0 0.0
        %546 = vmatprep.subr.mxu0 0.0
        %547 = vmatpush1.msra.mxu0 0.0
        %548 = vmatprep.subr.mxu0 0.0
        %549 = vmatpush1.msra.mxu0 0.0
        %550 = vmatprep.subr.mxu0 0.0
        %551 = vmatpush1.msra.mxu0 0.0
        %552 = vmatprep.subr.mxu0 0.0
        %553 = vmatpush1.msra.mxu0 0.0
        %554 = vmatprep.subr.mxu0 0.0
        %555 = vmatpush1.msra.mxu0 0.0
        %556 = vmatprep.subr.mxu0 0.0
        %557 = vmatpush1.msra.mxu0 0.0
        %558 = vmatprep.subr.mxu0 0.0
        %559 = vmatpush1.msra.mxu0 0.0
        %560 = vmatprep.subr.mxu0 0.0
        %561 = vmatpush1.msra.mxu0 0.0
        %562 = vmatprep.subr.mxu0 0.0
        %563 = vmatpush1.msra.mxu0 0.0
        %564 = vmatprep.subr.mxu0 0.0
        %565 = vmatpush1.msra.mxu0 0.0
        %566 = vmatprep.subr.mxu0 0.0
        %567 = vmatpush1.msra.mxu0 0.0
        %568 = vmatprep.subr.mxu0 0.0
        %569 = vmatpush1.msra.mxu0 0.0
        %570 = vmatprep.subr.mxu0 0.0
        %571 = vmatpush1.msra.mxu0 0.0
        %572 = vmatprep.subr.mxu0 0.0
        %573 = vmatpush1.msra.mxu0 0.0
        %574 = vmatprep.subr.mxu0 0.0
        %575 = vmatpush1.msra.mxu0 0.0
        %576 = vmatprep.mubr.f32.mxu0 0.0
        %577 = vmatmul.mubr.f32.gmra.mrb[0].mxu0 %v510
        %v578 = vpop.f32.mrb[0].mxu0
        %v579 = vadd.f32 %v491, %v578
        %v580 = vpop.f32.mrb[0].mxu0
        %v581 = vadd.f32 %v495, %v580
        %582 = vdwg.mxu0
        %583 = vmatprep.subr.mxu0 %v473
        %584 = vmatpush1.msra.mxu0 %v472
        %585 = vmatprep.subr.mxu0 %v477
        %586 = vmatpush1.msra.mxu0 %v476
        %587 = vmatprep.subr.mxu0 %v481
        %588 = vmatpush1.msra.mxu0 %v480
        %589 = vmatprep.subr.mxu0 %v485
        %590 = vmatpush1.msra.mxu0 %v484
        %591 = vmatprep.subr.mxu0 0.0
        %592 = vmatpush1.msra.mxu0 0.0
        %593 = vmatprep.subr.mxu0 0.0
        %594 = vmatpush1.msra.mxu0 0.0
        %595 = vmatprep.subr.mxu0 0.0
        %596 = vmatpush1.msra.mxu0 0.0
        %597 = vmatprep.subr.mxu0 0.0
        %598 = vmatpush1.msra.mxu0 0.0
        %599 = vmatprep.subr.mxu0 0.0
        %600 = vmatpush1.msra.mxu0 0.0
        %601 = vmatprep.subr.mxu0 0.0
        %602 = vmatpush1.msra.mxu0 0.0
        %603 = vmatprep.subr.mxu0 0.0
        %604 = vmatpush1.msra.mxu0 0.0
        %605 = vmatprep.subr.mxu0 0.0
        %606 = vmatpush1.msra.mxu0 0.0
        %607 = vmatprep.subr.mxu0 0.0
        %608 = vmatpush1.msra.mxu0 0.0
        %609 = vmatprep.subr.mxu0 0.0
        %610 = vmatpush1.msra.mxu0 0.0
        %611 = vmatprep.subr.mxu0 0.0
        %612 = vmatpush1.msra.mxu0 0.0
        %613 = vmatprep.subr.mxu0 0.0
        %614 = vmatpush1.msra.mxu0 0.0
        %615 = vmatprep.subr.mxu0 0.0
        %616 = vmatpush1.msra.mxu0 0.0
        %617 = vmatprep.subr.mxu0 0.0
        %618 = vmatpush1.msra.mxu0 0.0
        %619 = vmatprep.subr.mxu0 0.0
        %620 = vmatpush1.msra.mxu0 0.0
        %621 = vmatprep.subr.mxu0 0.0
        %622 = vmatpush1.msra.mxu0 0.0
        %623 = vmatprep.subr.mxu0 0.0
        %624 = vmatpush1.msra.mxu0 0.0
        %625 = vmatprep.subr.mxu0 0.0
        %626 = vmatpush1.msra.mxu0 0.0
        %627 = vmatprep.subr.mxu0 0.0
        %628 = vmatpush1.msra.mxu0 0.0
        %629 = vmatprep.subr.mxu0 0.0
        %630 = vmatpush1.msra.mxu0 0.0
        %631 = vmatprep.subr.mxu0 0.0
        %632 = vmatpush1.msra.mxu0 0.0
        %633 = vmatprep.subr.mxu0 0.0
        %634 = vmatpush1.msra.mxu0 0.0
        %635 = vmatprep.subr.mxu0 0.0
        %636 = vmatpush1.msra.mxu0 0.0
        %637 = vmatprep.subr.mxu0 0.0
        %638 = vmatpush1.msra.mxu0 0.0
        %639 = vmatprep.subr.mxu0 0.0
        %640 = vmatpush1.msra.mxu0 0.0
        %641 = vmatprep.subr.mxu0 0.0
        %642 = vmatpush1.msra.mxu0 0.0
        %643 = vmatprep.subr.mxu0 0.0
        %644 = vmatpush1.msra.mxu0 0.0
        %645 = vmatprep.subr.mxu0 0.0
        %646 = vmatpush1.msra.mxu0 0.0
        %647 = vmatprep.mubr.f32.mxu0 0.0
        %648 = vmatmul.mubr.f32.gmra.mrb[0].mxu0 %v510
        %v649 = vpop.f32.mrb[0].mxu0
        %v650 = vadd.f32 %v499, %v649
        %v651 = vpop.f32.mrb[0].mxu0
        %v652 = vadd.f32 %v503, %v651
        %653 = vdwg.mxu0
        %v654 = vld [vmem:[#allocation5] sm:$0xff]
        %v655 = vld [vmem:[#allocation5 + $0x8] sm:$0xff]
        %v656 = vld [vmem:[#allocation5 + $0x10] sm:$0xff]
        %v657 = vld [vmem:[#allocation5 + $0x18] sm:$0xff]
        %v658 = vld [vmem:[#allocation5 + $0x20] sm:$0xff]
        %v659 = vld [vmem:[#allocation5 + $0x28] sm:$0xff]
        %v660 = vld [vmem:[#allocation5 + $0x30] sm:$0xff]
        %v661 = vld [vmem:[#allocation5 + $0x38] sm:$0xff]
        %v662 = vld [vmem:[#allocation5 + $0x40] sm:$0xff]
        %v663 = vld [vmem:[#allocation5 + $0x48] sm:$0xff]
        %v664 = vld [vmem:[#allocation5 + $0x50] sm:$0xff]
        %v665 = vld [vmem:[#allocation5 + $0x58] sm:$0xff]
        %v666 = vld [vmem:[#allocation5 + $0x60] sm:$0xff]
        %v667 = vld [vmem:[#allocation5 + $0x68] sm:$0xff]
        %v668 = vld [vmem:[#allocation5 + $0x70] sm:$0xff]
        %v669 = vld [vmem:[#allocation5 + $0x78] sm:$0xff]
        %v670 = vld [vmem:[%s6] sm:$0xf]
        %v672 = vlaneseq
        %v673 = vshrl.u32 %v672, 7
        %v674 = vsub.s32 0, %v673
        %v675 = vrot.slane %v670, %v674
        %v676 = vlaneseq
        %v677 = vshrl.u32 %v676, 7
        %v678 = vsub.s32 1, %v677
        %v679 = vrot.slane %v670, %v678
        %v680 = vlaneseq
        %v681 = vshrl.u32 %v680, 7
        %v682 = vsub.s32 2, %v681
        %v683 = vrot.slane %v670, %v682
        %v684 = vlaneseq
        %v685 = vshrl.u32 %v684, 7
        %v686 = vsub.s32 3, %v685
        %v687 = vrot.slane %v670, %v686
        %692 = vmatprep.subr.mxu0 %v655
        %693 = vmatpush1.msra.mxu0 %v654
        %694 = vmatprep.subr.mxu0 %v659
        %695 = vmatpush1.msra.mxu0 %v658
        %696 = vmatprep.subr.mxu0 %v663
        %697 = vmatpush1.msra.mxu0 %v662
        %698 = vmatprep.subr.mxu0 %v667
        %699 = vmatpush1.msra.mxu0 %v666
        %700 = vmatprep.subr.mxu0 0.0
        %701 = vmatpush1.msra.mxu0 0.0
        %702 = vmatprep.subr.mxu0 0.0
        %703 = vmatpush1.msra.mxu0 0.0
        %704 = vmatprep.subr.mxu0 0.0
        %705 = vmatpush1.msra.mxu0 0.0
        %706 = vmatprep.subr.mxu0 0.0
        %707 = vmatpush1.msra.mxu0 0.0
        %708 = vmatprep.subr.mxu0 0.0
        %709 = vmatpush1.msra.mxu0 0.0
        %710 = vmatprep.subr.mxu0 0.0
        %711 = vmatpush1.msra.mxu0 0.0
        %712 = vmatprep.subr.mxu0 0.0
        %713 = vmatpush1.msra.mxu0 0.0
        %714 = vmatprep.subr.mxu0 0.0
        %715 = vmatpush1.msra.mxu0 0.0
        %716 = vmatprep.subr.mxu0 0.0
        %717 = vmatpush1.msra.mxu0 0.0
        %718 = vmatprep.subr.mxu0 0.0
        %719 = vmatpush1.msra.mxu0 0.0
        %720 = vmatprep.subr.mxu0 0.0
        %721 = vmatpush1.msra.mxu0 0.0
        %722 = vmatprep.subr.mxu0 0.0
        %723 = vmatpush1.msra.mxu0 0.0
        %724 = vmatprep.subr.mxu0 0.0
        %725 = vmatpush1.msra.mxu0 0.0
        %726 = vmatprep.subr.mxu0 0.0
        %727 = vmatpush1.msra.mxu0 0.0
        %728 = vmatprep.subr.mxu0 0.0
        %729 = vmatpush1.msra.mxu0 0.0
        %730 = vmatprep.subr.mxu0 0.0
        %731 = vmatpush1.msra.mxu0 0.0
        %732 = vmatprep.subr.mxu0 0.0
        %733 = vmatpush1.msra.mxu0 0.0
        %734 = vmatprep.subr.mxu0 0.0
        %735 = vmatpush1.msra.mxu0 0.0
        %736 = vmatprep.subr.mxu0 0.0
        %737 = vmatpush1.msra.mxu0 0.0
        %738 = vmatprep.subr.mxu0 0.0
        %739 = vmatpush1.msra.mxu0 0.0
        %740 = vmatprep.subr.mxu0 0.0
        %741 = vmatpush1.msra.mxu0 0.0
        %742 = vmatprep.subr.mxu0 0.0
        %743 = vmatpush1.msra.mxu0 0.0
        %744 = vmatprep.subr.mxu0 0.0
        %745 = vmatpush1.msra.mxu0 0.0
        %746 = vmatprep.subr.mxu0 0.0
        %747 = vmatpush1.msra.mxu0 0.0
        %748 = vmatprep.subr.mxu0 0.0
        %749 = vmatpush1.msra.mxu0 0.0
        %750 = vmatprep.subr.mxu0 0.0
        %751 = vmatpush1.msra.mxu0 0.0
        %752 = vmatprep.subr.mxu0 0.0
        %753 = vmatpush1.msra.mxu0 0.0
        %754 = vmatprep.subr.mxu0 0.0
        %755 = vmatpush1.msra.mxu0 0.0
        %756 = vmatprep.mubr.f32.mxu0 0.0
        %757 = vmatmul.mubr.f32.gmra.mrb[0].mxu0 %v510
        %v758 = vpop.f32.mrb[0].mxu0
        %v759 = vadd.f32 %v675, %v758
        %v760 = vpop.f32.mrb[0].mxu0
        %v761 = vadd.f32 %v679, %v760
        %762 = vdwg.mxu0
        %763 = vmatprep.subr.mxu0 %v657
        %764 = vmatpush1.msra.mxu0 %v656
        %765 = vmatprep.subr.mxu0 %v661
        %766 = vmatpush1.msra.mxu0 %v660
        %767 = vmatprep.subr.mxu0 %v665
        %768 = vmatpush1.msra.mxu0 %v664
        %769 = vmatprep.subr.mxu0 %v669
        %770 = vmatpush1.msra.mxu0 %v668
        %771 = vmatprep.subr.mxu0 0.0
        %772 = vmatpush1.msra.mxu0 0.0
        %773 = vmatprep.subr.mxu0 0.0
        %774 = vmatpush1.msra.mxu0 0.0
        %775 = vmatprep.subr.mxu0 0.0
        %776 = vmatpush1.msra.mxu0 0.0
        %777 = vmatprep.subr.mxu0 0.0
        %778 = vmatpush1.msra.mxu0 0.0
        %779 = vmatprep.subr.mxu0 0.0
        %780 = vmatpush1.msra.mxu0 0.0
        %781 = vmatprep.subr.mxu0 0.0
        %782 = vmatpush1.msra.mxu0 0.0
        %783 = vmatprep.subr.mxu0 0.0
        %784 = vmatpush1.msra.mxu0 0.0
        %785 = vmatprep.subr.mxu0 0.0
        %786 = vmatpush1.msra.mxu0 0.0
        %787 = vmatprep.subr.mxu0 0.0
        %788 = vmatpush1.msra.mxu0 0.0
        %789 = vmatprep.subr.mxu0 0.0
        %790 = vmatpush1.msra.mxu0 0.0
        %791 = vmatprep.subr.mxu0 0.0
        %792 = vmatpush1.msra.mxu0 0.0
        %793 = vmatprep.subr.mxu0 0.0
        %794 = vmatpush1.msra.mxu0 0.0
        %795 = vmatprep.subr.mxu0 0.0
        %796 = vmatpush1.msra.mxu0 0.0
        %797 = vmatprep.subr.mxu0 0.0
        %798 = vmatpush1.msra.mxu0 0.0
        %799 = vmatprep.subr.mxu0 0.0
        %800 = vmatpush1.msra.mxu0 0.0
        %801 = vmatprep.subr.mxu0 0.0
        %802 = vmatpush1.msra.mxu0 0.0
        %803 = vmatprep.subr.mxu0 0.0
        %804 = vmatpush1.msra.mxu0 0.0
        %805 = vmatprep.subr.mxu0 0.0
        %806 = vmatpush1.msra.mxu0 0.0
        %807 = vmatprep.subr.mxu0 0.0
        %808 = vmatpush1.msra.mxu0 0.0
        %809 = vmatprep.subr.mxu0 0.0
        %810 = vmatpush1.msra.mxu0 0.0
        %811 = vmatprep.subr.mxu0 0.0
        %812 = vmatpush1.msra.mxu0 0.0
        %813 = vmatprep.subr.mxu0 0.0
        %814 = vmatpush1.msra.mxu0 0.0
        %815 = vmatprep.subr.mxu0 0.0
        %816 = vmatpush1.msra.mxu0 0.0
        %817 = vmatprep.subr.mxu0 0.0
        %818 = vmatpush1.msra.mxu0 0.0
        %819 = vmatprep.subr.mxu0 0.0
        %820 = vmatpush1.msra.mxu0 0.0
        %821 = vmatprep.subr.mxu0 0.0
        %822 = vmatpush1.msra.mxu0 0.0
        %823 = vmatprep.subr.mxu0 0.0
        %824 = vmatpush1.msra.mxu0 0.0
        %825 = vmatprep.subr.mxu0 0.0
        %826 = vmatpush1.msra.mxu0 0.0
        %827 = vmatprep.mubr.f32.mxu0 0.0
        %828 = vmatmul.mubr.f32.gmra.mrb[0].mxu0 %v510
        %v829 = vpop.f32.mrb[0].mxu0
        %v830 = vadd.f32 %v683, %v829
        %v831 = vpop.f32.mrb[0].mxu0
        %v832 = vadd.f32 %v687, %v831
        %833 = vdwg.mxu0
        %v834 = vld [vmem:[%s7] sm:$0xff]
        %v835 = vld [vmem:[%s7 + $0x8] sm:$0xff]
        %v836 = vld [vmem:[%s7 + $0x10] sm:$0xff]
        %v837 = vld [vmem:[%s7 + $0x18] sm:$0xff]
        %v838 = vld [vmem:[%s8] sm:$0x1]
        %v840 = vlaneseq
        %v841 = vshrl.u32 %v840, 7
        %v842 = vsub.s32 0, %v841
        %v843 = vrot.slane %v838, %v842
        %845 = vmatprep.subr.mxu0 0.0
        %846 = vmatpush1.msra.mxu0 %v834
        %847 = vmatprep.subr.mxu0 0.0
        %848 = vmatpush1.msra.mxu0 %v835
        %849 = vmatprep.subr.mxu0 0.0
        %850 = vmatpush1.msra.mxu0 %v836
        %851 = vmatprep.subr.mxu0 0.0
        %852 = vmatpush1.msra.mxu0 %v837
        %853 = vmatprep.subr.mxu0 0.0
        %854 = vmatpush1.msra.mxu0 0.0
        %855 = vmatprep.subr.mxu0 0.0
        %856 = vmatpush1.msra.mxu0 0.0
        %857 = vmatprep.subr.mxu0 0.0
        %858 = vmatpush1.msra.mxu0 0.0
        %859 = vmatprep.subr.mxu0 0.0
        %860 = vmatpush1.msra.mxu0 0.0
        %861 = vmatprep.subr.mxu0 0.0
        %862 = vmatpush1.msra.mxu0 0.0
        %863 = vmatprep.subr.mxu0 0.0
        %864 = vmatpush1.msra.mxu0 0.0
        %865 = vmatprep.subr.mxu0 0.0
        %866 = vmatpush1.msra.mxu0 0.0
        %867 = vmatprep.subr.mxu0 0.0
        %868 = vmatpush1.msra.mxu0 0.0
        %869 = vmatprep.subr.mxu0 0.0
        %870 = vmatpush1.msra.mxu0 0.0
        %871 = vmatprep.subr.mxu0 0.0
        %872 = vmatpush1.msra.mxu0 0.0
        %873 = vmatprep.subr.mxu0 0.0
        %874 = vmatpush1.msra.mxu0 0.0
        %875 = vmatprep.subr.mxu0 0.0
        %876 = vmatpush1.msra.mxu0 0.0
        %877 = vmatprep.subr.mxu0 0.0
        %878 = vmatpush1.msra.mxu0 0.0
        %879 = vmatprep.subr.mxu0 0.0
        %880 = vmatpush1.msra.mxu0 0.0
        %881 = vmatprep.subr.mxu0 0.0
        %882 = vmatpush1.msra.mxu0 0.0
        %883 = vmatprep.subr.mxu0 0.0
        %884 = vmatpush1.msra.mxu0 0.0
        %885 = vmatprep.subr.mxu0 0.0
        %886 = vmatpush1.msra.mxu0 0.0
        %887 = vmatprep.subr.mxu0 0.0
        %888 = vmatpush1.msra.mxu0 0.0
        %889 = vmatprep.subr.mxu0 0.0
        %890 = vmatpush1.msra.mxu0 0.0
        %891 = vmatprep.subr.mxu0 0.0
        %892 = vmatpush1.msra.mxu0 0.0
        %893 = vmatprep.subr.mxu0 0.0
        %894 = vmatpush1.msra.mxu0 0.0
        %895 = vmatprep.subr.mxu0 0.0
        %896 = vmatpush1.msra.mxu0 0.0
        %897 = vmatprep.subr.mxu0 0.0
        %898 = vmatpush1.msra.mxu0 0.0
        %899 = vmatprep.subr.mxu0 0.0
        %900 = vmatpush1.msra.mxu0 0.0
        %901 = vmatprep.subr.mxu0 0.0
        %902 = vmatpush1.msra.mxu0 0.0
        %903 = vmatprep.subr.mxu0 0.0
        %904 = vmatpush1.msra.mxu0 0.0
        %905 = vmatprep.subr.mxu0 0.0
        %906 = vmatpush1.msra.mxu0 0.0
        %907 = vmatprep.subr.mxu0 0.0
        %908 = vmatpush1.msra.mxu0 0.0
        %909 = vmatprep.mubr.f32.mxu0 0.0
        %910 = vmatmul.mubr.f32.gmra.mrb[0].mxu0 %v510
        %v911 = vpop.f32.mrb[0].mxu0
        %v912 = vadd.f32 %v843, %v911
        %v913 = vpop.f32.mrb[0].mxu0
        %914 = vdwg.mxu0
        %v915 = vld [vmem:[#allocation2] sm:$0x1]
        %916 = vmatprep.subr.mxu0 0.0
        %917 = vmatpush1.xpose.msra.mxu0 %v759
        %918 = vmatprep.subr.mxu0 0.0
        %919 = vmatpush1.xpose.msra.mxu0 0.0
        %920 = vmatprep.subr.mxu0 0.0
        %921 = vmatpush1.xpose.msra.mxu0 0.0
        %922 = vmatprep.subr.mxu0 0.0
        %923 = vmatpush1.xpose.msra.mxu0 0.0
        %924 = vmatprep.subr.mxu0 0.0
        %925 = vmatpush1.xpose.msra.mxu0 0.0
        %926 = vmatprep.subr.mxu0 0.0
        %927 = vmatpush1.xpose.msra.mxu0 0.0
        %928 = vmatprep.subr.mxu0 0.0
        %929 = vmatpush1.xpose.msra.mxu0 0.0
        %930 = vmatprep.subr.mxu0 0.0
        %931 = vmatpush1.xpose.msra.mxu0 0.0
        %932 = vmatprep.subr.mxu0 0.0
        %933 = vmatpush1.xpose.msra.mxu0 0.0
        %934 = vmatprep.subr.mxu0 0.0
        %935 = vmatpush1.xpose.msra.mxu0 0.0
        %936 = vmatprep.subr.mxu0 0.0
        %937 = vmatpush1.xpose.msra.mxu0 0.0
        %938 = vmatprep.subr.mxu0 0.0
        %939 = vmatpush1.xpose.msra.mxu0 0.0
        %940 = vmatprep.subr.mxu0 0.0
        %941 = vmatpush1.xpose.msra.mxu0 0.0
        %942 = vmatprep.subr.mxu0 0.0
        %943 = vmatpush1.xpose.msra.mxu0 0.0
        %944 = vmatprep.subr.mxu0 0.0
        %945 = vmatpush1.xpose.msra.mxu0 0.0
        %946 = vmatprep.subr.mxu0 0.0
        %947 = vmatpush1.xpose.msra.mxu0 0.0
        %948 = vmatprep.subr.mxu0 0.0
        %949 = vmatpush1.xpose.msra.mxu0 0.0
        %950 = vmatprep.subr.mxu0 0.0
        %951 = vmatpush1.xpose.msra.mxu0 0.0
        %952 = vmatprep.subr.mxu0 0.0
        %953 = vmatpush1.xpose.msra.mxu0 0.0
        %954 = vmatprep.subr.mxu0 0.0
        %955 = vmatpush1.xpose.msra.mxu0 0.0
        %956 = vmatprep.subr.mxu0 0.0
        %957 = vmatpush1.xpose.msra.mxu0 0.0
        %958 = vmatprep.subr.mxu0 0.0
        %959 = vmatpush1.xpose.msra.mxu0 0.0
        %960 = vmatprep.subr.mxu0 0.0
        %961 = vmatpush1.xpose.msra.mxu0 0.0
        %962 = vmatprep.subr.mxu0 0.0
        %963 = vmatpush1.xpose.msra.mxu0 0.0
        %964 = vmatprep.subr.mxu0 0.0
        %965 = vmatpush1.xpose.msra.mxu0 0.0
        %966 = vmatprep.subr.mxu0 0.0
        %967 = vmatpush1.xpose.msra.mxu0 0.0
        %968 = vmatprep.subr.mxu0 0.0
        %969 = vmatpush1.xpose.msra.mxu0 0.0
        %970 = vmatprep.subr.mxu0 0.0
        %971 = vmatpush1.xpose.msra.mxu0 0.0
        %972 = vmatprep.subr.mxu0 0.0
        %973 = vmatpush1.xpose.msra.mxu0 0.0
        %974 = vmatprep.subr.mxu0 0.0
        %975 = vmatpush1.xpose.msra.mxu0 0.0
        %976 = vmatprep.subr.mxu0 0.0
        %977 = vmatpush1.xpose.msra.mxu0 0.0
        %978 = vmatprep.subr.mxu0 0.0
        %979 = vmatpush1.xpose.msra.mxu0 0.0
        %980 = vmatprep.mubr.f32.mxu0 0.0
        %981 = vmatmul.mubr.f32.gmra.mrb[0].mxu0 %v579
        %v982 = vpop.f32.mrb[0].mxu0
        %v983 = vadd.f32 0.0, %v982
        %v984 = vpop.f32.mrb[0].mxu0
        %985 = vdwg.mxu0
        %vm986 = vcmask 64512
        %v987 = vsel %vm986, %v983, -inf
        %988 = vmax.xlane.f32.xlu0 %v987
        %v989 = vpop.xlane.xlu0 %988
        %v990 = vsub.f32 %v983, %v989
        %v991 = vmul.f32 %v990, 1.442695
        %v992 = vpow.pop %v991
        %v993 = vsel %vm986, %v992, 0.0
        %994 = vadd.xlane.f32.xlu0 %v993
        %v995 = vpop.xlane.xlu0 %994
        %v996 = vrcp.pop %v995
        %v997 = vmul.f32 %v992, %v996
        %v998 = vsel %vm986, %v997, 0.0
        %v999 = vrot.slane %v998, 4
        %v1000 = vadd.f32 %v998, %v999
        %v1001 = vrot.slane %v1000, 2
        %v1002 = vadd.f32 %v1000, %v1001
        %v1003 = vrot.slane %v1002, 1
        %v1004 = vadd.f32 %v1002, %v1003
        %v1005 = vmul.f32 %v1004, 0.125
        %v1007 = vsel %vm986, %v1005, 0
        %1009 = vmatprep.subr.mxu0 0.0
        %1010 = vmatpush1.msra.mxu0 %v912
        %1011 = vmatprep.subr.mxu0 0.0
        %1012 = vmatpush1.msra.mxu0 0.0
        %1013 = vmatprep.subr.mxu0 0.0
        %1014 = vmatpush1.msra.mxu0 0.0
        %1015 = vmatprep.subr.mxu0 0.0
        %1016 = vmatpush1.msra.mxu0 0.0
        %1017 = vmatprep.subr.mxu0 0.0
        %1018 = vmatpush1.msra.mxu0 0.0
        %1019 = vmatprep.subr.mxu0 0.0
        %1020 = vmatpush1.msra.mxu0 0.0
        %1021 = vmatprep.subr.mxu0 0.0
        %1022 = vmatpush1.msra.mxu0 0.0
        %1023 = vmatprep.subr.mxu0 0.0
        %1024 = vmatpush1.msra.mxu0 0.0
        %1025 = vmatprep.subr.mxu0 0.0
        %1026 = vmatpush1.msra.mxu0 0.0
        %1027 = vmatprep.subr.mxu0 0.0
        %1028 = vmatpush1.msra.mxu0 0.0
        %1029 = vmatprep.subr.mxu0 0.0
        %1030 = vmatpush1.msra.mxu0 0.0
        %1031 = vmatprep.subr.mxu0 0.0
        %1032 = vmatpush1.msra.mxu0 0.0
        %1033 = vmatprep.subr.mxu0 0.0
        %1034 = vmatpush1.msra.mxu0 0.0
        %1035 = vmatprep.subr.mxu0 0.0
        %1036 = vmatpush1.msra.mxu0 0.0
        %1037 = vmatprep.subr.mxu0 0.0
        %1038 = vmatpush1.msra.mxu0 0.0
        %1039 = vmatprep.subr.mxu0 0.0
        %1040 = vmatpush1.msra.mxu0 0.0
        %1041 = vmatprep.subr.mxu0 0.0
        %1042 = vmatpush1.msra.mxu0 0.0
        %1043 = vmatprep.subr.mxu0 0.0
        %1044 = vmatpush1.msra.mxu0 0.0
        %1045 = vmatprep.subr.mxu0 0.0
        %1046 = vmatpush1.msra.mxu0 0.0
        %1047 = vmatprep.subr.mxu0 0.0
        %1048 = vmatpush1.msra.mxu0 0.0
        %1049 = vmatprep.subr.mxu0 0.0
        %1050 = vmatpush1.msra.mxu0 0.0
        %1051 = vmatprep.subr.mxu0 0.0
        %1052 = vmatpush1.msra.mxu0 0.0
        %1053 = vmatprep.subr.mxu0 0.0
        %1054 = vmatpush1.msra.mxu0 0.0
        %1055 = vmatprep.subr.mxu0 0.0
        %1056 = vmatpush1.msra.mxu0 0.0
        %1057 = vmatprep.subr.mxu0 0.0
        %1058 = vmatpush1.msra.mxu0 0.0
        %1059 = vmatprep.subr.mxu0 0.0
        %1060 = vmatpush1.msra.mxu0 0.0
        %1061 = vmatprep.subr.mxu0 0.0
        %1062 = vmatpush1.msra.mxu0 0.0
        %1063 = vmatprep.subr.mxu0 0.0
        %1064 = vmatpush1.msra.mxu0 0.0
        %1065 = vmatprep.subr.mxu0 0.0
        %1066 = vmatpush1.msra.mxu0 0.0
        %1067 = vmatprep.subr.mxu0 0.0
        %1068 = vmatpush1.msra.mxu0 0.0
        %1069 = vmatprep.subr.mxu0 0.0
        %1070 = vmatpush1.msra.mxu0 0.0
        %1071 = vmatprep.subr.mxu0 0.0
        %1072 = vmatpush1.msra.mxu0 0.0
        %1073 = vmatprep.mubr.f32.mxu0 0.0
        %1074 = vmatmul.mubr.f32.gmra.mrb[0].mxu0 %v1007
        %v1075 = vpop.f32.mrb[0].mxu0
        %v1076 = vadd.f32 0.0, %v1075
        %v1077 = vpop.f32.mrb[0].mxu0
        %1078 = vdwg.mxu0
        %v1079 = vadd.f32 %v915, %v1076
        %1080 = vmatprep.subr.mxu0 0.0
        %1081 = vmatpush1.xpose.msra.mxu0 %v761
        %1082 = vmatprep.subr.mxu0 0.0
        %1083 = vmatpush1.xpose.msra.mxu0 0.0
        %1084 = vmatprep.subr.mxu0 0.0
        %1085 = vmatpush1.xpose.msra.mxu0 0.0
        %1086 = vmatprep.subr.mxu0 0.0
        %1087 = vmatpush1.xpose.msra.mxu0 0.0
        %1088 = vmatprep.subr.mxu0 0.0
        %1089 = vmatpush1.xpose.msra.mxu0 0.0
        %1090 = vmatprep.subr.mxu0 0.0
        %1091 = vmatpush1.xpose.msra.mxu0 0.0
        %1092 = vmatprep.subr.mxu0 0.0
        %1093 = vmatpush1.xpose.msra.mxu0 0.0
        %1094 = vmatprep.subr.mxu0 0.0
        %1095 = vmatpush1.xpose.msra.mxu0 0.0
        %1096 = vmatprep.subr.mxu0 0.0
        %1097 = vmatpush1.xpose.msra.mxu0 0.0
        %1098 = vmatprep.subr.mxu0 0.0
        %1099 = vmatpush1.xpose.msra.mxu0 0.0
        %1100 = vmatprep.subr.mxu0 0.0
        %1101 = vmatpush1.xpose.msra.mxu0 0.0
        %1102 = vmatprep.subr.mxu0 0.0
        %1103 = vmatpush1.xpose.msra.mxu0 0.0
        %1104 = vmatprep.subr.mxu0 0.0
        %1105 = vmatpush1.xpose.msra.mxu0 0.0
        %1106 = vmatprep.subr.mxu0 0.0
        %1107 = vmatpush1.xpose.msra.mxu0 0.0
        %1108 = vmatprep.subr.mxu0 0.0
        %1109 = vmatpush1.xpose.msra.mxu0 0.0
        %1110 = vmatprep.subr.mxu0 0.0
        %1111 = vmatpush1.xpose.msra.mxu0 0.0
        %1112 = vmatprep.subr.mxu0 0.0
        %1113 = vmatpush1.xpose.msra.mxu0 0.0
        %1114 = vmatprep.subr.mxu0 0.0
        %1115 = vmatpush1.xpose.msra.mxu0 0.0
        %1116 = vmatprep.subr.mxu0 0.0
        %1117 = vmatpush1.xpose.msra.mxu0 0.0
        %1118 = vmatprep.subr.mxu0 0.0
        %1119 = vmatpush1.xpose.msra.mxu0 0.0
        %1120 = vmatprep.subr.mxu0 0.0
        %1121 = vmatpush1.xpose.msra.mxu0 0.0
        %1122 = vmatprep.subr.mxu0 0.0
        %1123 = vmatpush1.xpose.msra.mxu0 0.0
        %1124 = vmatprep.subr.mxu0 0.0
        %1125 = vmatpush1.xpose.msra.mxu0 0.0
        %1126 = vmatprep.subr.mxu0 0.0
        %1127 = vmatpush1.xpose.msra.mxu0 0.0
        %1128 = vmatprep.subr.mxu0 0.0
        %1129 = vmatpush1.xpose.msra.mxu0 0.0
        %1130 = vmatprep.subr.mxu0 0.0
        %1131 = vmatpush1.xpose.msra.mxu0 0.0
        %1132 = vmatprep.subr.mxu0 0.0
        %1133 = vmatpush1.xpose.msra.mxu0 0.0
        %1134 = vmatprep.subr.mxu0 0.0
        %1135 = vmatpush1.xpose.msra.mxu0 0.0
        %1136 = vmatprep.subr.mxu0 0.0
        %1137 = vmatpush1.xpose.msra.mxu0 0.0
        %1138 = vmatprep.subr.mxu0 0.0
        %1139 = vmatpush1.xpose.msra.mxu0 0.0
        %1140 = vmatprep.subr.mxu0 0.0
        %1141 = vmatpush1.xpose.msra.mxu0 0.0
        %1142 = vmatprep.subr.mxu0 0.0
        %1143 = vmatpush1.xpose.msra.mxu0 0.0
        %1144 = vmatprep.mubr.f32.mxu0 0.0
        %1145 = vmatmul.mubr.f32.gmra.mrb[0].mxu0 %v581
        %v1146 = vpop.f32.mrb[0].mxu0
        %v1147 = vadd.f32 0.0, %v1146
        %v1148 = vpop.f32.mrb[0].mxu0
        %1149 = vdwg.mxu0
        %v1150 = vsel %vm986, %v1147, -inf
        %1151 = vmax.xlane.f32.xlu0 %v1150
        %v1152 = vpop.xlane.xlu0 %1151
        %v1153 = vsub.f32 %v1147, %v1152
        %v1154 = vmul.f32 %v1153, 1.442695
        %v1155 = vpow.pop %v1154
        %v1156 = vsel %vm986, %v1155, 0.0
        %1157 = vadd.xlane.f32.xlu0 %v1156
        %v1158 = vpop.xlane.xlu0 %1157
        %v1159 = vrcp.pop %v1158
        %v1160 = vmul.f32 %v1155, %v1159
        %v1161 = vsel %vm986, %v1160, 0.0
        %v1162 = vrot.slane %v1161, 4
        %v1163 = vadd.f32 %v1161, %v1162
        %v1164 = vrot.slane %v1163, 2
        %v1165 = vadd.f32 %v1163, %v1164
        %v1166 = vrot.slane %v1165, 1
        %v1167 = vadd.f32 %v1165, %v1166
        %v1168 = vmul.f32 %v1167, 0.125
        %1170 = vrot.lane.b32.xlu0 %v912, 127
        %v1171 = vpop.permute.xlu0 %1170
        %v1174 = vsel %vm986, %v1168, 0
        %1176 = vmatprep.subr.mxu0 0.0
        %1177 = vmatpush1.msra.mxu0 %v1171
        %1178 = vmatprep.subr.mxu0 0.0
        %1179 = vmatpush1.msra.mxu0 0.0
        %1180 = vmatprep.subr.mxu0 0.0
        %1181 = vmatpush1.msra.mxu0 0.0
        %1182 = vmatprep.subr.mxu0 0.0
        %1183 = vmatpush1.msra.mxu0 0.0
        %1184 = vmatprep.subr.mxu0 0.0
        %1185 = vmatpush1.msra.mxu0 0.0
        %1186 = vmatprep.subr.mxu0 0.0
        %1187 = vmatpush1.msra.mxu0 0.0
        %1188 = vmatprep.subr.mxu0 0.0
        %1189 = vmatpush1.msra.mxu0 0.0
        %1190 = vmatprep.subr.mxu0 0.0
        %1191 = vmatpush1.msra.mxu0 0.0
        %1192 = vmatprep.subr.mxu0 0.0
        %1193 = vmatpush1.msra.mxu0 0.0
        %1194 = vmatprep.subr.mxu0 0.0
        %1195 = vmatpush1.msra.mxu0 0.0
        %1196 = vmatprep.subr.mxu0 0.0
        %1197 = vmatpush1.msra.mxu0 0.0
        %1198 = vmatprep.subr.mxu0 0.0
        %1199 = vmatpush1.msra.mxu0 0.0
        %1200 = vmatprep.subr.mxu0 0.0
        %1201 = vmatpush1.msra.mxu0 0.0
        %1202 = vmatprep.subr.mxu0 0.0
        %1203 = vmatpush1.msra.mxu0 0.0
        %1204 = vmatprep.subr.mxu0 0.0
        %1205 = vmatpush1.msra.mxu0 0.0
        %1206 = vmatprep.subr.mxu0 0.0
        %1207 = vmatpush1.msra.mxu0 0.0
        %1208 = vmatprep.subr.mxu0 0.0
        %1209 = vmatpush1.msra.mxu0 0.0
        %1210 = vmatprep.subr.mxu0 0.0
        %1211 = vmatpush1.msra.mxu0 0.0
        %1212 = vmatprep.subr.mxu0 0.0
        %1213 = vmatpush1.msra.mxu0 0.0
        %1214 = vmatprep.subr.mxu0 0.0
        %1215 = vmatpush1.msra.mxu0 0.0
        %1216 = vmatprep.subr.mxu0 0.0
        %1217 = vmatpush1.msra.mxu0 0.0
        %1218 = vmatprep.subr.mxu0 0.0
        %1219 = vmatpush1.msra.mxu0 0.0
        %1220 = vmatprep.subr.mxu0 0.0
        %1221 = vmatpush1.msra.mxu0 0.0
        %1222 = vmatprep.subr.mxu0 0.0
        %1223 = vmatpush1.msra.mxu0 0.0
        %1224 = vmatprep.subr.mxu0 0.0
        %1225 = vmatpush1.msra.mxu0 0.0
        %1226 = vmatprep.subr.mxu0 0.0
        %1227 = vmatpush1.msra.mxu0 0.0
        %1228 = vmatprep.subr.mxu0 0.0
        %1229 = vmatpush1.msra.mxu0 0.0
        %1230 = vmatprep.subr.mxu0 0.0
        %1231 = vmatpush1.msra.mxu0 0.0
        %1232 = vmatprep.subr.mxu0 0.0
        %1233 = vmatpush1.msra.mxu0 0.0
        %1234 = vmatprep.subr.mxu0 0.0
        %1235 = vmatpush1.msra.mxu0 0.0
        %1236 = vmatprep.subr.mxu0 0.0
        %1237 = vmatpush1.msra.mxu0 0.0
        %1238 = vmatprep.subr.mxu0 0.0
        %1239 = vmatpush1.msra.mxu0 0.0
        %1240 = vmatprep.mubr.f32.mxu0 0.0
        %1241 = vmatmul.mubr.f32.gmra.mrb[0].mxu0 %v1174
        %v1242 = vpop.f32.mrb[0].mxu0
        %v1243 = vadd.f32 0.0, %v1242
        %v1244 = vpop.f32.mrb[0].mxu0
        %1245 = vdwg.mxu0
        %v1246 = vadd.f32 %v1079, %v1243
        %1247 = vmatprep.subr.mxu0 0.0
        %1248 = vmatpush1.xpose.msra.mxu0 %v830
        %1249 = vmatprep.subr.mxu0 0.0
        %1250 = vmatpush1.xpose.msra.mxu0 0.0
        %1251 = vmatprep.subr.mxu0 0.0
        %1252 = vmatpush1.xpose.msra.mxu0 0.0
        %1253 = vmatprep.subr.mxu0 0.0
        %1254 = vmatpush1.xpose.msra.mxu0 0.0
        %1255 = vmatprep.subr.mxu0 0.0
        %1256 = vmatpush1.xpose.msra.mxu0 0.0
        %1257 = vmatprep.subr.mxu0 0.0
        %1258 = vmatpush1.xpose.msra.mxu0 0.0
        %1259 = vmatprep.subr.mxu0 0.0
        %1260 = vmatpush1.xpose.msra.mxu0 0.0
        %1261 = vmatprep.subr.mxu0 0.0
        %1262 = vmatpush1.xpose.msra.mxu0 0.0
        %1263 = vmatprep.subr.mxu0 0.0
        %1264 = vmatpush1.xpose.msra.mxu0 0.0
        %1265 = vmatprep.subr.mxu0 0.0
        %1266 = vmatpush1.xpose.msra.mxu0 0.0
        %1267 = vmatprep.subr.mxu0 0.0
        %1268 = vmatpush1.xpose.msra.mxu0 0.0
        %1269 = vmatprep.subr.mxu0 0.0
        %1270 = vmatpush1.xpose.msra.mxu0 0.0
        %1271 = vmatprep.subr.mxu0 0.0
        %1272 = vmatpush1.xpose.msra.mxu0 0.0
        %1273 = vmatprep.subr.mxu0 0.0
        %1274 = vmatpush1.xpose.msra.mxu0 0.0
        %1275 = vmatprep.subr.mxu0 0.0
        %1276 = vmatpush1.xpose.msra.mxu0 0.0
        %1277 = vmatprep.subr.mxu0 0.0
        %1278 = vmatpush1.xpose.msra.mxu0 0.0
        %1279 = vmatprep.subr.mxu0 0.0
        %1280 = vmatpush1.xpose.msra.mxu0 0.0
        %1281 = vmatprep.subr.mxu0 0.0
        %1282 = vmatpush1.xpose.msra.mxu0 0.0
        %1283 = vmatprep.subr.mxu0 0.0
        %1284 = vmatpush1.xpose.msra.mxu0 0.0
        %1285 = vmatprep.subr.mxu0 0.0
        %1286 = vmatpush1.xpose.msra.mxu0 0.0
        %1287 = vmatprep.subr.mxu0 0.0
        %1288 = vmatpush1.xpose.msra.mxu0 0.0
        %1289 = vmatprep.subr.mxu0 0.0
        %1290 = vmatpush1.xpose.msra.mxu0 0.0
        %1291 = vmatprep.subr.mxu0 0.0
        %1292 = vmatpush1.xpose.msra.mxu0 0.0
        %1293 = vmatprep.subr.mxu0 0.0
        %1294 = vmatpush1.xpose.msra.mxu0 0.0
        %1295 = vmatprep.subr.mxu0 0.0
        %1296 = vmatpush1.xpose.msra.mxu0 0.0
        %1297 = vmatprep.subr.mxu0 0.0
        %1298 = vmatpush1.xpose.msra.mxu0 0.0
        %1299 = vmatprep.subr.mxu0 0.0
        %1300 = vmatpush1.xpose.msra.mxu0 0.0
        %1301 = vmatprep.subr.mxu0 0.0
        %1302 = vmatpush1.xpose.msra.mxu0 0.0
        %1303 = vmatprep.subr.mxu0 0.0
        %1304 = vmatpush1.xpose.msra.mxu0 0.0
        %1305 = vmatprep.subr.mxu0 0.0
        %1306 = vmatpush1.xpose.msra.mxu0 0.0
        %1307 = vmatprep.subr.mxu0 0.0
        %1308 = vmatpush1.xpose.msra.mxu0 0.0
        %1309 = vmatprep.subr.mxu0 0.0
        %1310 = vmatpush1.xpose.msra.mxu0 0.0
        %1311 = vmatprep.mubr.f32.mxu0 0.0
        %1312 = vmatmul.mubr.f32.gmra.mrb[0].mxu0 %v650
        %v1313 = vpop.f32.mrb[0].mxu0
        %v1314 = vadd.f32 0.0, %v1313
        %v1315 = vpop.f32.mrb[0].mxu0
        %1316 = vdwg.mxu0
        %v1317 = vsel %vm986, %v1314, -inf
        %1318 = vmax.xlane.f32.xlu0 %v1317
        %v1319 = vpop.xlane.xlu0 %1318
        %v1320 = vsub.f32 %v1314, %v1319
        %v1321 = vmul.f32 %v1320, 1.442695
        %v1322 = vpow.pop %v1321
        %v1323 = vsel %vm986, %v1322, 0.0
        %1324 = vadd.xlane.f32.xlu0 %v1323
        %v1325 = vpop.xlane.xlu0 %1324
        %v1326 = vrcp.pop %v1325
        %v1327 = vmul.f32 %v1322, %v1326
        %v1328 = vsel %vm986, %v1327, 0.0
        %v1329 = vrot.slane %v1328, 4
        %v1330 = vadd.f32 %v1328, %v1329
        %v1331 = vrot.slane %v1330, 2
        %v1332 = vadd.f32 %v1330, %v1331
        %v1333 = vrot.slane %v1332, 1
        %v1334 = vadd.f32 %v1332, %v1333
        %v1335 = vmul.f32 %v1334, 0.125
        %1336 = vrot.lane.b32.xlu0 %v912, 126
        %v1337 = vpop.permute.xlu0 %1336
        %v1340 = vsel %vm986, %v1335, 0
        %1342 = vmatprep.subr.mxu0 0.0
        %1343 = vmatpush1.msra.mxu0 %v1337
        %1344 = vmatprep.subr.mxu0 0.0
        %1345 = vmatpush1.msra.mxu0 0.0
        %1346 = vmatprep.subr.mxu0 0.0
        %1347 = vmatpush1.msra.mxu0 0.0
        %1348 = vmatprep.subr.mxu0 0.0
        %1349 = vmatpush1.msra.mxu0 0.0
        %1350 = vmatprep.subr.mxu0 0.0
        %1351 = vmatpush1.msra.mxu0 0.0
        %1352 = vmatprep.subr.mxu0 0.0
        %1353 = vmatpush1.msra.mxu0 0.0
        %1354 = vmatprep.subr.mxu0 0.0
        %1355 = vmatpush1.msra.mxu0 0.0
        %1356 = vmatprep.subr.mxu0 0.0
        %1357 = vmatpush1.msra.mxu0 0.0
        %1358 = vmatprep.subr.mxu0 0.0
        %1359 = vmatpush1.msra.mxu0 0.0
        %1360 = vmatprep.subr.mxu0 0.0
        %1361 = vmatpush1.msra.mxu0 0.0
        %1362 = vmatprep.subr.mxu0 0.0
        %1363 = vmatpush1.msra.mxu0 0.0
        %1364 = vmatprep.subr.mxu0 0.0
        %1365 = vmatpush1.msra.mxu0 0.0
        %1366 = vmatprep.subr.mxu0 0.0
        %1367 = vmatpush1.msra.mxu0 0.0
        %1368 = vmatprep.subr.mxu0 0.0
        %1369 = vmatpush1.msra.mxu0 0.0
        %1370 = vmatprep.subr.mxu0 0.0
        %1371 = vmatpush1.msra.mxu0 0.0
        %1372 = vmatprep.subr.mxu0 0.0
        %1373 = vmatpush1.msra.mxu0 0.0
        %1374 = vmatprep.subr.mxu0 0.0
        %1375 = vmatpush1.msra.mxu0 0.0
        %1376 = vmatprep.subr.mxu0 0.0
        %1377 = vmatpush1.msra.mxu0 0.0
        %1378 = vmatprep.subr.mxu0 0.0
        %1379 = vmatpush1.msra.mxu0 0.0
        %1380 = vmatprep.subr.mxu0 0.0
        %1381 = vmatpush1.msra.mxu0 0.0
        %1382 = vmatprep.subr.mxu0 0.0
        %1383 = vmatpush1.msra.mxu0 0.0
        %1384 = vmatprep.subr.mxu0 0.0
        %1385 = vmatpush1.msra.mxu0 0.0
        %1386 = vmatprep.subr.mxu0 0.0
        %1387 = vmatpush1.msra.mxu0 0.0
        %1388 = vmatprep.subr.mxu0 0.0
        %1389 = vmatpush1.msra.mxu0 0.0
        %1390 = vmatprep.subr.mxu0 0.0
        %1391 = vmatpush1.msra.mxu0 0.0
        %1392 = vmatprep.subr.mxu0 0.0
        %1393 = vmatpush1.msra.mxu0 0.0
        %1394 = vmatprep.subr.mxu0 0.0
        %1395 = vmatpush1.msra.mxu0 0.0
        %1396 = vmatprep.subr.mxu0 0.0
        %1397 = vmatpush1.msra.mxu0 0.0
        %1398 = vmatprep.subr.mxu0 0.0
        %1399 = vmatpush1.msra.mxu0 0.0
        %1400 = vmatprep.subr.mxu0 0.0
        %1401 = vmatpush1.msra.mxu0 0.0
        %1402 = vmatprep.subr.mxu0 0.0
        %1403 = vmatpush1.msra.mxu0 0.0
        %1404 = vmatprep.subr.mxu0 0.0
        %1405 = vmatpush1.msra.mxu0 0.0
        %1406 = vmatprep.mubr.f32.mxu0 0.0
        %1407 = vmatmul.mubr.f32.gmra.mrb[0].mxu0 %v1340
        %v1408 = vpop.f32.mrb[0].mxu0
        %v1409 = vadd.f32 0.0, %v1408
        %v1410 = vpop.f32.mrb[0].mxu0
        %1411 = vdwg.mxu0
        %v1412 = vadd.f32 %v1246, %v1409
        %1413 = vmatprep.subr.mxu0 0.0
        %1414 = vmatpush1.xpose.msra.mxu0 %v832
        %1415 = vmatprep.subr.mxu0 0.0
        %1416 = vmatpush1.xpose.msra.mxu0 0.0
        %1417 = vmatprep.subr.mxu0 0.0
        %1418 = vmatpush1.xpose.msra.mxu0 0.0
        %1419 = vmatprep.subr.mxu0 0.0
        %1420 = vmatpush1.xpose.msra.mxu0 0.0
        %1421 = vmatprep.subr.mxu0 0.0
        %1422 = vmatpush1.xpose.msra.mxu0 0.0
        %1423 = vmatprep.subr.mxu0 0.0
        %1424 = vmatpush1.xpose.msra.mxu0 0.0
        %1425 = vmatprep.subr.mxu0 0.0
        %1426 = vmatpush1.xpose.msra.mxu0 0.0
        %1427 = vmatprep.subr.mxu0 0.0
        %1428 = vmatpush1.xpose.msra.mxu0 0.0
        %1429 = vmatprep.subr.mxu0 0.0
        %1430 = vmatpush1.xpose.msra.mxu0 0.0
        %1431 = vmatprep.subr.mxu0 0.0
        %1432 = vmatpush1.xpose.msra.mxu0 0.0
        %1433 = vmatprep.subr.mxu0 0.0
        %1434 = vmatpush1.xpose.msra.mxu0 0.0
        %1435 = vmatprep.subr.mxu0 0.0
        %1436 = vmatpush1.xpose.msra.mxu0 0.0
        %1437 = vmatprep.subr.mxu0 0.0
        %1438 = vmatpush1.xpose.msra.mxu0 0.0
        %1439 = vmatprep.subr.mxu0 0.0
        %1440 = vmatpush1.xpose.msra.mxu0 0.0
        %1441 = vmatprep.subr.mxu0 0.0
        %1442 = vmatpush1.xpose.msra.mxu0 0.0
        %1443 = vmatprep.subr.mxu0 0.0
        %1444 = vmatpush1.xpose.msra.mxu0 0.0
        %1445 = vmatprep.subr.mxu0 0.0
        %1446 = vmatpush1.xpose.msra.mxu0 0.0
        %1447 = vmatprep.subr.mxu0 0.0
        %1448 = vmatpush1.xpose.msra.mxu0 0.0
        %1449 = vmatprep.subr.mxu0 0.0
        %1450 = vmatpush1.xpose.msra.mxu0 0.0
        %1451 = vmatprep.subr.mxu0 0.0
        %1452 = vmatpush1.xpose.msra.mxu0 0.0
        %1453 = vmatprep.subr.mxu0 0.0
        %1454 = vmatpush1.xpose.msra.mxu0 0.0
        %1455 = vmatprep.subr.mxu0 0.0
        %1456 = vmatpush1.xpose.msra.mxu0 0.0
        %1457 = vmatprep.subr.mxu0 0.0
        %1458 = vmatpush1.xpose.msra.mxu0 0.0
        %1459 = vmatprep.subr.mxu0 0.0
        %1460 = vmatpush1.xpose.msra.mxu0 0.0
        %1461 = vmatprep.subr.mxu0 0.0
        %1462 = vmatpush1.xpose.msra.mxu0 0.0
        %1463 = vmatprep.subr.mxu0 0.0
        %1464 = vmatpush1.xpose.msra.mxu0 0.0
        %1465 = vmatprep.subr.mxu0 0.0
        %1466 = vmatpush1.xpose.msra.mxu0 0.0
        %1467 = vmatprep.subr.mxu0 0.0
        %1468 = vmatpush1.xpose.msra.mxu0 0.0
        %1469 = vmatprep.subr.mxu0 0.0
        %1470 = vmatpush1.xpose.msra.mxu0 0.0
        %1471 = vmatprep.subr.mxu0 0.0
        %1472 = vmatpush1.xpose.msra.mxu0 0.0
        %1473 = vmatprep.subr.mxu0 0.0
        %1474 = vmatpush1.xpose.msra.mxu0 0.0
        %1475 = vmatprep.subr.mxu0 0.0
        %1476 = vmatpush1.xpose.msra.mxu0 0.0
        %1477 = vmatprep.mubr.f32.mxu0 0.0
        %1478 = vmatmul.mubr.f32.gmra.mrb[0].mxu0 %v652
        %v1479 = vpop.f32.mrb[0].mxu0
        %v1480 = vadd.f32 0.0, %v1479
        %v1481 = vpop.f32.mrb[0].mxu0
        %1482 = vdwg.mxu0
        %v1483 = vsel %vm986, %v1480, -inf
        %1484 = vmax.xlane.f32.xlu0 %v1483
        %v1485 = vpop.xlane.xlu0 %1484
        %v1486 = vsub.f32 %v1480, %v1485
        %v1487 = vmul.f32 %v1486, 1.442695
        %v1488 = vpow.pop %v1487
        %v1489 = vsel %vm986, %v1488, 0.0
        %1490 = vadd.xlane.f32.xlu0 %v1489
        %v1491 = vpop.xlane.xlu0 %1490
        %v1492 = vrcp.pop %v1491
        %v1493 = vmul.f32 %v1488, %v1492
        %v1494 = vsel %vm986, %v1493, 0.0
        %v1495 = vrot.slane %v1494, 4
        %v1496 = vadd.f32 %v1494, %v1495
        %v1497 = vrot.slane %v1496, 2
        %v1498 = vadd.f32 %v1496, %v1497
        %v1499 = vrot.slane %v1498, 1
        %v1500 = vadd.f32 %v1498, %v1499
        %v1501 = vmul.f32 %v1500, 0.125
        %1502 = vrot.lane.b32.xlu0 %v912, 125
        %v1503 = vpop.permute.xlu0 %1502
        %v1506 = vsel %vm986, %v1501, 0
        %1508 = vmatprep.subr.mxu0 0.0
        %1509 = vmatpush1.msra.mxu0 %v1503
        %1510 = vmatprep.subr.mxu0 0.0
        %1511 = vmatpush1.msra.mxu0 0.0
        %1512 = vmatprep.subr.mxu0 0.0
        %1513 = vmatpush1.msra.mxu0 0.0
        %1514 = vmatprep.subr.mxu0 0.0
        %1515 = vmatpush1.msra.mxu0 0.0
        %1516 = vmatprep.subr.mxu0 0.0
        %1517 = vmatpush1.msra.mxu0 0.0
        %1518 = vmatprep.subr.mxu0 0.0
        %1519 = vmatpush1.msra.mxu0 0.0
        %1520 = vmatprep.subr.mxu0 0.0
        %1521 = vmatpush1.msra.mxu0 0.0
        %1522 = vmatprep.subr.mxu0 0.0
        %1523 = vmatpush1.msra.mxu0 0.0
        %1524 = vmatprep.subr.mxu0 0.0
        %1525 = vmatpush1.msra.mxu0 0.0
        %1526 = vmatprep.subr.mxu0 0.0
        %1527 = vmatpush1.msra.mxu0 0.0
        %1528 = vmatprep.subr.mxu0 0.0
        %1529 = vmatpush1.msra.mxu0 0.0
        %1530 = vmatprep.subr.mxu0 0.0
        %1531 = vmatpush1.msra.mxu0 0.0
        %1532 = vmatprep.subr.mxu0 0.0
        %1533 = vmatpush1.msra.mxu0 0.0
        %1534 = vmatprep.subr.mxu0 0.0
        %1535 = vmatpush1.msra.mxu0 0.0
        %1536 = vmatprep.subr.mxu0 0.0
        %1537 = vmatpush1.msra.mxu0 0.0
        %1538 = vmatprep.subr.mxu0 0.0
        %1539 = vmatpush1.msra.mxu0 0.0
        %1540 = vmatprep.subr.mxu0 0.0
        %1541 = vmatpush1.msra.mxu0 0.0
        %1542 = vmatprep.subr.mxu0 0.0
        %1543 = vmatpush1.msra.mxu0 0.0
        %1544 = vmatprep.subr.mxu0 0.0
        %1545 = vmatpush1.msra.mxu0 0.0
        %1546 = vmatprep.subr.mxu0 0.0
        %1547 = vmatpush1.msra.mxu0 0.0
        %1548 = vmatprep.subr.mxu0 0.0
        %1549 = vmatpush1.msra.mxu0 0.0
        %1550 = vmatprep.subr.mxu0 0.0
        %1551 = vmatpush1.msra.mxu0 0.0
        %1552 = vmatprep.subr.mxu0 0.0
        %1553 = vmatpush1.msra.mxu0 0.0
        %1554 = vmatprep.subr.mxu0 0.0
        %1555 = vmatpush1.msra.mxu0 0.0
        %1556 = vmatprep.subr.mxu0 0.0
        %1557 = vmatpush1.msra.mxu0 0.0
        %1558 = vmatprep.subr.mxu0 0.0
        %1559 = vmatpush1.msra.mxu0 0.0
        %1560 = vmatprep.subr.mxu0 0.0
        %1561 = vmatpush1.msra.mxu0 0.0
        %1562 = vmatprep.subr.mxu0 0.0
        %1563 = vmatpush1.msra.mxu0 0.0
        %1564 = vmatprep.subr.mxu0 0.0
        %1565 = vmatpush1.msra.mxu0 0.0
        %1566 = vmatprep.subr.mxu0 0.0
        %1567 = vmatpush1.msra.mxu0 0.0
        %1568 = vmatprep.subr.mxu0 0.0
        %1569 = vmatpush1.msra.mxu0 0.0
        %1570 = vmatprep.subr.mxu0 0.0
        %1571 = vmatpush1.msra.mxu0 0.0
        %1572 = vmatprep.mubr.f32.mxu0 0.0
        %1573 = vmatmul.mubr.f32.gmra.mrb[0].mxu0 %v1506
        %v1574 = vpop.f32.mrb[0].mxu0
        %v1575 = vadd.f32 0.0, %v1574
        %v1576 = vpop.f32.mrb[0].mxu0
        %1577 = vdwg.mxu0
        %v1578 = vadd.f32 %v1412, %v1575
        %v1579 = vsub.f32 0.0, %v1578
        %v1580 = vmul.f32 %v1579, 1.442695
        %v1581 = vpow.pop %v1580
        %v1582 = vadd.f32 %v1581, 1.0
        %v1583 = vrcp.pop %v1582
        %vm1584 = vcmask 0
        %1585 = vst.msk [vmem:[%s384] sm:$0x1] %vm1584, %v1583
        %p1586 = scmp.lt.s32.totalorder %s25, 1
        %s1587 = scalar_select %p1586, %s25, 1
        %s1588 = scalar_lea.vmem %s10, %s1587
        // Predicated region
        $region69: #{tpu_custom_call.1} parent=59 // pred_check
          %p1589 = pneg %p258
        $region70: #{tpu_custom_call.1} parent=59 // pred_check_branch
          %1591 = sbr.rel (%p1589) target = $region72
        $region71: #{tpu_custom_call.1} parent=59 // pred_region
          _
        $region72: #{tpu_custom_call.1} parent=59 // pred_fallthru
          _
      $region60: #{tpu_custom_call.1} parent=5 // pred_fallthru
        _
      %p1592 = scmp.le.s32.totalorder 2, %s20
      // Predicated region
      $region73: #{tpu_custom_call.1} parent=5 // pred_check
        %p1593 = pneg %p1592
      $region74: #{tpu_custom_call.1} parent=5 // pred_check_branch
        %1595 = sbr.rel (%p1593) target = $region76
      $region75: #{tpu_custom_call.1} parent=5 // pred_region
        %s1596 = ssub.s32 %s20, 2
        // Predicated region
        $region77: #{tpu_custom_call.1} parent=75 // pred_check
          %p1597 = pneg %p264
        $region78: #{tpu_custom_call.1} parent=75 // pred_check_branch
          %1599 = sbr.rel (%p1597) target = $region80
        $region79: #{tpu_custom_call.1} parent=75 // pred_region
          %p1600 = scmp.lt.s32.totalorder %s26, 1
          %s1601 = scalar_select %p1600, %s26, 1
          %s1602 = scalar_lea.vmem %s10, %s1601
        $region80: #{tpu_custom_call.1} parent=75 // pred_fallthru
          _
      $region76: #{tpu_custom_call.1} parent=5 // pred_fallthru
        _
    $region6: #{tpu_custom_call.1} parent=1 // loop_footer
      %s24 = sadd.s32 1, %s20
    $region7: #{tpu_custom_call.1} parent=1 // loop_footer_branch
      %19 = sbr.rel target = $region3
    $region8: #{tpu_custom_call.1} parent=1 // loop_exit
      _
    %1603 = vsyncpa [#allocation4], 1
    %s1604 = scalar_lea.sflag [#allocation4], 1
    %1605 = vsyncpa %s1604, 1
    %1606 = vsyncpa [#allocation6], 1

</llo_original>
